<compile_context>
chip_gen: v7x
topology: tpu7x:2x2x1
jax: 0.10.0
libtpu: 0.0.40
codegen_flags: <defaults>
</compile_context>

<pallas_src>
import functools

import numpy as np
import jax
import jax.numpy as jnp
from jax.experimental import pallas as pl
from jax.experimental.pallas import tpu as pltpu


def _gaussian_weights(radius: int) -> np.ndarray:
    sigma = float(radius)
    kr = 2 * radius                      # truncate at 2*sigma each side
    offs = np.arange(-kr, kr + 1, dtype=np.float64)
    w = np.exp(-(offs ** 2) / (2.0 * sigma ** 2))
    return w / w.sum()


def _band_matrix(n: int, radius: int) -> np.ndarray:
    """(n, n) matrix B with B[i, j] = sum of taps k such that clamp(i + k - kr) == j.

    `B @ x` == truncated Gaussian blur along the leading axis with edge-replication
    padding folded directly into the weights (matches np.pad(mode='edge')).
    """
    w = _gaussian_weights(radius)
    kr = 2 * radius
    band = np.zeros((n, n), np.float64)
    for i in range(n):
        for k in range(2 * kr + 1):
            j = min(max(i + k - kr, 0), n - 1)
            band[i, j] += w[k]
    return band.astype(np.float32)


def _blur_kernel(x_ref, bh_ref, bwt_ref, o_ref, tmp_ref, *, cb, H, W,
                 compute_dtype, precision, round_output, out_min, out_max):
    """Blur cb (H, W) planes: one stacked horizontal matmul + per-plane vertical."""
    xv = x_ref[...]
    if jnp.issubdtype(xv.dtype, jnp.integer):
        xv = xv.astype(jnp.int32).astype(jnp.float32)
    x2 = xv.astype(compute_dtype).reshape(cb * H, W)

    # Horizontal pass: ONE MXU matmul for all cb planes (B_w^T stationary).
    tmp = jnp.dot(x2, bwt_ref[...], precision=precision,
                  preferred_element_type=jnp.float32)
    tmp_ref[...] = tmp.astype(compute_dtype).reshape(cb, H, W)

    bh = bh_ref[...]   # (H, H) vertical band

    def body(p, carry):
        res = jnp.dot(bh, tmp_ref[p], precision=precision,
                      preferred_element_type=jnp.float32)
        if round_output:
            # round-to-nearest + clamp so float error cannot wrap the int cast
            res = jnp.clip(jnp.floor(res + 0.5), out_min, out_max)
            res = res.astype(jnp.int32)
        o_ref[p] = res.astype(o_ref.dtype)
        return carry

    jax.lax.fori_loop(0, cb, body, 0, unroll=True)


def _vmem_config():
    """Returns (block budget bytes, vmem_limit_bytes, cb cap) for the local chip."""
    phys = None
    try:
        phys = getattr(pltpu.get_tpu_info(), "vmem_capacity_bytes", None)
    except Exception:
        phys = None
    if phys is not None and phys >= 128 * 1024 * 1024:        # v5e / v6e: 128 MiB
        return 48 * 1024 * 1024, 64 * 1024 * 1024, 16
    return 20 * 1024 * 1024, 32 * 1024 * 1024, 8              # v7x-safe default


def gaussian_blur(x: jax.Array, radius: int) -> jax.Array:
    """Apply Gaussian blur with sigma = radius to an NCHW image tensor."""
    assert radius >= 2
    N, C, H, W = x.shape
    NC = N * C
    xf = x.reshape(NC, H, W)             # free metadata reshape, no copy

    is_int = bool(jnp.issubdtype(x.dtype, jnp.integer))
    # uint8 pixel values are exact in bf16 -> bf16 MXU operands (f32 accumulate);
    # float images keep f32 operands at HIGHEST precision.
    compute_dtype = jnp.bfloat16 if is_int else jnp.float32
    precision = jax.lax.Precision.DEFAULT if is_int else jax.lax.Precision.HIGHEST

    bh = jnp.asarray(_band_matrix(H, radius), dtype=compute_dtype)       # (H, H)
    bwt = jnp.asarray(_band_matrix(W, radius).T, dtype=compute_dtype)    # (W, W)

    itemsize = jnp.dtype(x.dtype).itemsize
    csize = jnp.dtype(compute_dtype).itemsize
    budget, vmem_limit, cb_cap = _vmem_config()
    # double-buffered in/out blocks + tmp scratch + transient cast / f32 matmul result
    per_plane = 4 * H * W * itemsize + H * W * (2 * csize + 8)
    band_bytes = 2 * (H * H + W * W) * csize      # band matrices (double-buffered)
    cb_max = max(1, min(cb_cap, int((budget - band_bytes) // max(per_plane, 1))))
    # Keep >= 4 grid steps when possible: feeds both v7x TensorCores and keeps the
    # in/out DMA pipeline overlapped with compute on every generation.
    cb = max(1, min(cb_max, max(1, NC // 4)))
    grid = (pl.cdiv(NC, cb),)   # ragged last block allowed: OOB writeback is masked

    if is_int:
        info = jnp.iinfo(x.dtype)
        out_min, out_max = float(info.min), float(info.max)
    else:
        out_min, out_max = 0.0, 0.0

    kern = functools.partial(
        _blur_kernel, cb=cb, H=H, W=W, compute_dtype=compute_dtype,
        precision=precision, round_output=is_int, out_min=out_min, out_max=out_max)

    flops = 2 * NC * (H * W * W + H * H * W)
    bytes_accessed = 2 * NC * H * W * itemsize + (H * H + W * W) * csize

    out = pl.pallas_call(
        kern,
        out_shape=jax.ShapeDtypeStruct((NC, H, W), x.dtype),
        grid=grid,
        in_specs=[
            pl.BlockSpec((cb, H, W), lambda g: (g, 0, 0)),   # cb planes per step
            pl.BlockSpec((H, H), lambda g: (0, 0)),          # resident vertical band
            pl.BlockSpec((W, W), lambda g: (0, 0)),          # resident horizontal band
        ],
        out_specs=pl.BlockSpec((cb, H, W), lambda g: (g, 0, 0)),
        scratch_shapes=[pltpu.VMEM((cb, H, W), compute_dtype)],   # horizontal result
        compiler_params=pltpu.CompilerParams(
            dimension_semantics=("parallel",),
            vmem_limit_bytes=vmem_limit,
        ),
        cost_estimate=pl.CostEstimate(
            flops=flops, transcendentals=0, bytes_accessed=bytes_accessed),
    )(xf, bh, bwt)
    return out.reshape(N, C, H, W)


def gaussian_blur_forward(data: dict, radius: int) -> dict:
    """Mirrors GaussianBlur.forward: blurs data['image'] and returns data."""
    data["image"] = gaussian_blur(data["image"], radius)
    return data


def _reference_blur(x: np.ndarray, radius: int) -> np.ndarray:
    """Pure numpy reference (edge-padded separable truncated Gaussian)."""
    w = _gaussian_weights(radius)
    kr = 2 * radius
    xp = np.pad(x.astype(np.float64), ((0, 0), (0, 0), (kr, kr), (kr, kr)), mode="edge")
    N, C, H, W = x.shape
    tmp = np.zeros((N, C, xp.shape[2], W), np.float64)
    for k in range(2 * kr + 1):
        tmp += w[k] * xp[:, :, :, k:k + W]
    out = np.zeros((N, C, H, W), np.float64)
    for k in range(2 * kr + 1):
        out += w[k] * tmp[:, :, k:k + H, :]
    if np.issubdtype(x.dtype, np.integer):
        info = np.iinfo(x.dtype)
        out = np.clip(np.floor(out + 0.5), info.min, info.max)
    return out.astype(x.dtype)


if __name__ == "__main__":
    radius = 2
    key = jax.random.PRNGKey(0)
    kf, ku = jax.random.split(key)

    # float32 path (f32 MXU operands, Precision.HIGHEST)
    xf = jax.random.uniform(kf, (2, 4, 16, 16), dtype=jnp.float32)
    data = gaussian_blur_forward({"image": xf}, radius)
    outf = jax.block_until_ready(data["image"])
    np.testing.assert_allclose(
        np.asarray(outf), _reference_blur(np.asarray(xf), radius),
        rtol=1e-4, atol=1e-4)

    # uint8 path (bf16 MXU operands, round + clamp before the integer cast)
    xu = jax.random.randint(ku, (2, 4, 16, 16), 0, 256, dtype=jnp.int32).astype(jnp.uint8)
    outu = jax.block_until_ready(gaussian_blur(xu, radius))
    refu = _reference_blur(np.asarray(xu), radius)
    np.testing.assert_allclose(
        np.asarray(outu).astype(np.float64), refu.astype(np.float64), atol=2.5)

    print("KERNEL_OK")
</pallas_src>

<mosaic_0001>
module attributes {stable_mosaic.version = 11 : i64} {
  func.func @_blur_kernel(%arg0: i32, %arg1: memref<2x16x16xf32, #tpu.memory_space<vmem>>, %arg2: memref<16x16xf32, #tpu.memory_space<vmem>>, %arg3: memref<16x16xf32, #tpu.memory_space<vmem>>, %arg4: memref<2x16x16xf32, #tpu.memory_space<vmem>>, %arg5: memref<2x16x16xf32, #tpu.memory_space<vmem>>) attributes {dimension_semantics = [#tpu.dimension_semantics<parallel>], iteration_bounds = array<i64: 4>, scalar_prefetch = 0 : i64, scratch_operands = 1 : i64, tpu.core_type = #tpu.core_type<tc>, window_params = [{transform_indices = @transform_0, window_bounds = array<i64: 2, 16, 16>}, {pipeline_mode = #tpu.pipeline_mode<synchronous>, transform_indices = @transform_1, window_bounds = array<i64: 16, 16>}, {pipeline_mode = #tpu.pipeline_mode<synchronous>, transform_indices = @transform_2, window_bounds = array<i64: 16, 16>}, {transform_indices = @transform_3, window_bounds = array<i64: 2, 16, 16>}]} {
    %c0 = arith.constant 0 : index
    %c0_0 = arith.constant 0 : index
    %c0_1 = arith.constant 0 : index
    %0 = vector.load %arg1[%c0, %c0_0, %c0_1] : memref<2x16x16xf32, #tpu.memory_space<vmem>>, vector<2x16x16xf32>
    %1 = vector.shape_cast %0 : vector<2x16x16xf32> to vector<32x16xf32>
    %c0_2 = arith.constant 0 : index
    %c0_3 = arith.constant 0 : index
    %2 = vector.load %arg3[%c0_2, %c0_3] : memref<16x16xf32, #tpu.memory_space<vmem>>, vector<16x16xf32>
    %cst = arith.constant dense<0.000000e+00> : vector<32x16xf32>
    %3 = tpu.matmul %1, %2, %cst {dimension_numbers = #tpu.dot_dimension_numbers<[1], [0], [0], [1], [0, 0, 1, 1], [], []>, precision = #tpu.contract_precision<fp32>} : vector<32x16xf32>, vector<16x16xf32>, vector<32x16xf32> -> vector<32x16xf32>
    %4 = vector.shape_cast %3 : vector<32x16xf32> to vector<2x16x16xf32>
    %c0_4 = arith.constant 0 : index
    %c0_5 = arith.constant 0 : index
    %c0_6 = arith.constant 0 : index
    %5 = vector.load %arg5[%c0_4, %c0_5, %c0_6] : memref<2x16x16xf32, #tpu.memory_space<vmem>>, vector<2x16x16xf32>
    tpu.vector_store %arg5[%c0_4, %c0_5, %c0_6], %4 {strides = array<i32>} : memref<2x16x16xf32, #tpu.memory_space<vmem>>, vector<2x16x16xf32>,
    %c0_7 = arith.constant 0 : index
    %c0_8 = arith.constant 0 : index
    %6 = vector.load %arg2[%c0_7, %c0_8] : memref<16x16xf32, #tpu.memory_space<vmem>>, vector<16x16xf32>
    %c0_i32 = arith.constant 0 : i32
    %7 = arith.index_cast %c0_i32 : i32 to index
    %c0_9 = arith.constant 0 : index
    %c0_10 = arith.constant 0 : index
    %8 = vector.load %arg5[%7, %c0_9, %c0_10] : memref<2x16x16xf32, #tpu.memory_space<vmem>>, vector<1x16x16xf32>
    %9 = vector.shape_cast %8 : vector<1x16x16xf32> to vector<16x16xf32>
    %cst_11 = arith.constant dense<0.000000e+00> : vector<16x16xf32>
    %10 = tpu.matmul %6, %9, %cst_11 {dimension_numbers = #tpu.dot_dimension_numbers<[1], [0], [0], [1], [0, 0, 1, 1], [], []>, precision = #tpu.contract_precision<fp32>} : vector<16x16xf32>, vector<16x16xf32>, vector<16x16xf32> -> vector<16x16xf32>
    %11 = arith.index_cast %c0_i32 : i32 to index
    %c0_12 = arith.constant 0 : index
    %c0_13 = arith.constant 0 : index
    %12 = vector.load %arg4[%11, %c0_12, %c0_13] : memref<2x16x16xf32, #tpu.memory_space<vmem>>, vector<1x16x16xf32>
    %13 = vector.shape_cast %12 : vector<1x16x16xf32> to vector<16x16xf32>
    %14 = vector.shape_cast %10 : vector<16x16xf32> to vector<1x16x16xf32>
    tpu.vector_store %arg4[%11, %c0_12, %c0_13], %14 {strides = array<i32>} : memref<2x16x16xf32, #tpu.memory_space<vmem>>, vector<1x16x16xf32>,
    %c1_i32 = arith.constant 1 : i32
    %15 = arith.index_cast %c1_i32 : i32 to index
    %c0_14 = arith.constant 0 : index
    %c0_15 = arith.constant 0 : index
    %16 = vector.load %arg5[%15, %c0_14, %c0_15] : memref<2x16x16xf32, #tpu.memory_space<vmem>>, vector<1x16x16xf32>
    %17 = vector.shape_cast %16 : vector<1x16x16xf32> to vector<16x16xf32>
    %cst_16 = arith.constant dense<0.000000e+00> : vector<16x16xf32>
    %18 = tpu.matmul %6, %17, %cst_16 {dimension_numbers = #tpu.dot_dimension_numbers<[1], [0], [0], [1], [0, 0, 1, 1], [], []>, precision = #tpu.contract_precision<fp32>} : vector<16x16xf32>, vector<16x16xf32>, vector<16x16xf32> -> vector<16x16xf32>
    %19 = arith.index_cast %c1_i32 : i32 to index
    %c0_17 = arith.constant 0 : index
    %c0_18 = arith.constant 0 : index
    %20 = vector.load %arg4[%19, %c0_17, %c0_18] : memref<2x16x16xf32, #tpu.memory_space<vmem>>, vector<1x16x16xf32>
    %21 = vector.shape_cast %20 : vector<1x16x16xf32> to vector<16x16xf32>
    %22 = vector.shape_cast %18 : vector<16x16xf32> to vector<1x16x16xf32>
    tpu.vector_store %arg4[%19, %c0_17, %c0_18], %22 {strides = array<i32>} : memref<2x16x16xf32, #tpu.memory_space<vmem>>, vector<1x16x16xf32>,
    %c2_i32 = arith.constant 2 : i32
    return
  }
  func.func @transform_0(%arg0: i32) -> (i32, i32, i32) {
    %c0_i32 = arith.constant 0 : i32
    %c0_i32_0 = arith.constant 0 : i32
    %c0_i32_1 = arith.constant 0 : i32
    return %arg0, %c0_i32, %c0_i32_0 : i32, i32, i32
  }
  func.func @transform_1(%arg0: i32) -> (i32, i32) {
    %c0_i32 = arith.constant 0 : i32
    %c0_i32_0 = arith.constant 0 : i32
    %c0_i32_1 = arith.constant 0 : i32
    return %c0_i32, %c0_i32_0 : i32, i32
  }
  func.func @transform_2(%arg0: i32) -> (i32, i32) {
    %c0_i32 = arith.constant 0 : i32
    %c0_i32_0 = arith.constant 0 : i32
    %c0_i32_1 = arith.constant 0 : i32
    return %c0_i32, %c0_i32_0 : i32, i32
  }
  func.func @transform_3(%arg0: i32) -> (i32, i32, i32) {
    %c0_i32 = arith.constant 0 : i32
    %c0_i32_0 = arith.constant 0 : i32
    %c0_i32_1 = arith.constant 0 : i32
    return %arg0, %c0_i32, %c0_i32_0 : i32, i32, i32
  }
}

</mosaic_0001>

<llo_original>
// kernel: tpu_custom_call.1
$region0: #{tpu_custom_call.1}
  #allocation0 [shape = 'u32[]', space=smem, size = 0x4, offset = 0x4, fixed_abs, tag = 'smem constant byte address 0x4 - core index']
  #allocation1 [shape = 'u32[144,128]{1,0:T(1,128)}', space=vmem, size = 0x12000, scoped, tag = 'internal scratch']
  #allocation2 [shape = 'f32[2,16,16]{2,1,0:T(8,128)}', space=vmem, size = 0x4000, scoped, tag = 'scratch operand']
  %s0 = inlined_call_operand.hbm [shape: f32[8,16,16], index: 0, kind: input, shape index: {}]
  %s1 = inlined_call_operand.hbm [shape: f32[16,16], index: 1, kind: input, shape index: {}]
  %s2 = inlined_call_operand.hbm [shape: f32[16,16], index: 2, kind: input, shape index: {}]
  %s3 = inlined_call_operand.hbm [shape: f32[8,16,16], index: 3, kind: output, shape index: {}]
  %s4 = sld [smem:[#allocation0]]
  $region57: #{tpu_custom_call.1} parent=0
    _
  %s6 = ssub.s32 1, %s4
  %s7 = scalar_select 0, %s6, %s4
  $region1: #{tpu_custom_call.1} parent=0
    #allocation3 [shape = 'u8[32768]{0}', space=vmem, size = 0x8000, scoped, tag = 'input window, operand 0']
    #allocation4 [shape = 's32[2]{0}', space=sflag, size = 0x8, scoped, tag = 'scoped memory for tpu_custom_call.1']
    #allocation5 [shape = 's32[2]{0}', space=sflag, size = 0x8, scoped, tag = 'scoped memory for tpu_custom_call.1']
    #allocation6 [shape = 'u8[8192]{0}', space=vmem, size = 0x2000, scoped, tag = 'input window, operand 1, single buffered']
    #allocation7 [shape = 's32[1]{0}', space=sflag, size = 0x4, scoped, tag = 'scoped memory for tpu_custom_call.1']
    #allocation8 [shape = 'u8[8192]{0}', space=vmem, size = 0x2000, scoped, tag = 'input window, operand 2, single buffered']
    #allocation9 [shape = 'u8[32768]{0}', space=vmem, size = 0x8000, scoped, tag = 'output window, operand 0']
    %8 = vsyncpa [#allocation4], 0
    %s9 = scalar_lea.sflag [#allocation4], 1
    %10 = vsyncpa %s9, 0
    %11 = vsyncpa [#allocation7], 0
    %12 = vsyncpa [#allocation5], 0
    %s13 = scalar_lea.sflag [#allocation5], 1
    %14 = vsyncpa %s13, 0
    loop: start=0, step=1, limit=6
    $region2: #{tpu_custom_call.1} parent=1 // loop_pre_header
      _
    $region3: #{tpu_custom_call.1} parent=1 // loop_header
      %s16 = sphi 0, %s20
      %p17 = scmp.ge.s32.totalorder %s16, 6
      %s26 = sphi 0, %s28
      %s29 = sphi 0, %s26
      %s30 = sphi 0, %s29
      %s46 = sphi 0, %s30
      %s50 = sphi 0, %s50
      %s52 = sphi 0, %s50
      %s53 = sphi 0, %s52
      %s67 = sphi 0, %s53
      %s71 = sphi 0, %s71
      %s73 = sphi 0, %s71
      %s74 = sphi 0, %s73
      %s88 = sphi 0, %s74
      %s94 = sphi 0, %s96
      %s97 = sphi 0, %s94
      %s98 = sphi 0, %s97
      %s114 = sphi 0, %s98
    $region4: #{tpu_custom_call.1} parent=1 // loop_header_branch
      %19 = sbr.rel (%p17) target = $region8
    $region5: #{tpu_custom_call.1} parent=1 // loop_body
      %s21 = ssub.s32 %s16, 1
      %s22 = ssub.s32 %s16, 2
      %s23 = sadd.s32 %s16, 1
      %s24 = ssub.s32 %s16, %s23
      %p25 = scmp.eq.s32.totalorder %s24, 0
      %s27 = sadd.s32 %s26, 1
      %s28 = scalar_select %p25, %s26, %s27
      %p31 = pneg %p25
      %p32 = scmp.eq.s32.totalorder %s16, 3
      %p33 = por %p31, %p32
      %p34 = scmp.ne.s32.totalorder %s26, %s29
      %p35 = scmp.eq.s32.totalorder %s16, 0
      %p36 = por %p34, %p35
      %p37 = scmp.ne.s32.totalorder %s26, %s29
      %p38 = scmp.eq.s32.totalorder %s21, 3
      %p39 = por %p37, %p38
      %p40 = scmp.ne.s32.totalorder %s29, %s30
      %p41 = scmp.eq.s32.totalorder %s21, 0
      %p42 = por %p40, %p41
      %p43 = scmp.ne.s32.totalorder %s29, %s30
      %p44 = scmp.eq.s32.totalorder %s22, 3
      %p45 = por %p43, %p44
      %p47 = scmp.ne.s32.totalorder %s30, %s46
      %p48 = scmp.eq.s32.totalorder %s22, 0
      %p49 = por %p47, %p48
      %s51 = sadd.s32 %s50, 1
      %p54 = scmp.eq.s32.totalorder %s16, 3
      %p55 = scmp.ne.s32.totalorder %s50, %s52
      %p56 = scmp.eq.s32.totalorder %s16, 0
      %p57 = por %p55, %p56
      %p58 = scmp.ne.s32.totalorder %s50, %s52
      %p59 = scmp.eq.s32.totalorder %s21, 3
      %p60 = por %p58, %p59
      %p61 = scmp.ne.s32.totalorder %s52, %s53
      %p62 = scmp.eq.s32.totalorder %s21, 0
      %p63 = por %p61, %p62
      %p64 = scmp.ne.s32.totalorder %s52, %s53
      %p65 = scmp.eq.s32.totalorder %s22, 3
      %p66 = por %p64, %p65
      %p68 = scmp.ne.s32.totalorder %s53, %s67
      %p69 = scmp.eq.s32.totalorder %s22, 0
      %p70 = por %p68, %p69
      %s72 = sadd.s32 %s71, 1
      %p75 = scmp.eq.s32.totalorder %s16, 3
      %p76 = scmp.ne.s32.totalorder %s71, %s73
      %p77 = scmp.eq.s32.totalorder %s16, 0
      %p78 = por %p76, %p77
      %p79 = scmp.ne.s32.totalorder %s71, %s73
      %p80 = scmp.eq.s32.totalorder %s21, 3
      %p81 = por %p79, %p80
      %p82 = scmp.ne.s32.totalorder %s73, %s74
      %p83 = scmp.eq.s32.totalorder %s21, 0
      %p84 = por %p82, %p83
      %p85 = scmp.ne.s32.totalorder %s73, %s74
      %p86 = scmp.eq.s32.totalorder %s22, 3
      %p87 = por %p85, %p86
      %p89 = scmp.ne.s32.totalorder %s74, %s88
      %p90 = scmp.eq.s32.totalorder %s22, 0
      %p91 = por %p89, %p90
      %s92 = ssub.s32 %s16, %s23
      %p93 = scmp.eq.s32.totalorder %s92, 0
      %s95 = sadd.s32 %s94, 1
      %s96 = scalar_select %p93, %s94, %s95
      %p99 = pneg %p93
      %p100 = scmp.eq.s32.totalorder %s16, 3
      %p101 = por %p99, %p100
      %p102 = scmp.ne.s32.totalorder %s94, %s97
      %p103 = scmp.eq.s32.totalorder %s16, 0
      %p104 = por %p102, %p103
      %p105 = scmp.ne.s32.totalorder %s94, %s97
      %p106 = scmp.eq.s32.totalorder %s21, 3
      %p107 = por %p105, %p106
      %p108 = scmp.ne.s32.totalorder %s97, %s98
      %p109 = scmp.eq.s32.totalorder %s21, 0
      %p110 = por %p108, %p109
      %p111 = scmp.ne.s32.totalorder %s97, %s98
      %p112 = scmp.eq.s32.totalorder %s22, 3
      %p113 = por %p111, %p112
      %p115 = scmp.ne.s32.totalorder %s98, %s114
      %p116 = scmp.eq.s32.totalorder %s22, 0
      %p117 = por %p115, %p116
      %p118 = scmp.le.s32.totalorder 1, %s16
      %p119 = scmp.lt.s32.totalorder %s16, 5
      %p120 = pnand %p118, %p119
      %p121 = pneg %p120
      // Predicated region
      $region9: #{tpu_custom_call.1} parent=5 // pred_check
        _
      $region10: #{tpu_custom_call.1} parent=5 // pred_check_branch
        %123 = sbr.rel (%p120) target = $region12
      $region11: #{tpu_custom_call.1} parent=5 // pred_region
        %s124 = ssub.s32 %s16, 1
        // Predicated region
        $region13: #{tpu_custom_call.1} parent=11 // pred_check
          %p125 = pneg %p63
        $region14: #{tpu_custom_call.1} parent=11 // pred_check_branch
          %127 = sbr.rel (%p125) target = $region16
        $region15: #{tpu_custom_call.1} parent=11 // pred_region
          %s129 = ssub.s32 256, 256
          %130 = vsyncadd [#allocation7], %s129
          %s131 = sshll.u32 [#allocation6], 4
          %s132 = int_to_ptr.vmem [resolvable:$true] %s131
          %137 = dma.hbm_to_vmem [thread:$0]  %s1, 256, %s132, [#allocation7], 128, 128, 8
        $region16: #{tpu_custom_call.1} parent=11 // pred_fallthru
          _
        // Predicated region
        $region17: #{tpu_custom_call.1} parent=11 // pred_check
          %p138 = pneg %p84
        $region18: #{tpu_custom_call.1} parent=11 // pred_check_branch
          %140 = sbr.rel (%p138) target = $region20
        $region19: #{tpu_custom_call.1} parent=11 // pred_region
          %s142 = ssub.s32 256, 256
          %143 = vsyncadd [#allocation7], %s142
          %s144 = sshll.u32 [#allocation8], 4
          %s145 = int_to_ptr.vmem [resolvable:$true] %s144
          %150 = dma.hbm_to_vmem [thread:$0]  %s2, 256, %s145, [#allocation7], 128, 128, 8
        $region20: #{tpu_custom_call.1} parent=11 // pred_fallthru
          _
      $region12: #{tpu_custom_call.1} parent=5 // pred_fallthru
        _
      %p151 = scmp.lt.s32.totalorder %s16, 4
      // Predicated region
      $region21: #{tpu_custom_call.1} parent=5 // pred_check
        %p152 = pneg %p151
      $region22: #{tpu_custom_call.1} parent=5 // pred_check_branch
        %154 = sbr.rel (%p152) target = $region24
      $region23: #{tpu_custom_call.1} parent=5 // pred_region
        // Predicated region
        $region25: #{tpu_custom_call.1} parent=23 // pred_check
          %p155 = pneg %p36
        $region26: #{tpu_custom_call.1} parent=23 // pred_check_branch
          %157 = sbr.rel (%p155) target = $region28
        $region27: #{tpu_custom_call.1} parent=23 // pred_region
          %s158 = sand.u32 %s26, 1
          %s159 = scalar_lea.sflag [#allocation4], %s158
          %s160 = sand.u32 %s26, 1
          %s161 = smul.addr %s160, 32
          %s162 = scalar_lea.vmem [#allocation3], %s161
          %s163 = smul.u32 2, %s16
          %s165 = ssub.s32 512, 512
          %166 = vsyncadd %s159, %s165
          %s167 = smul.addr %s163, 2
          %s168 = smul.addr %s167, 128
          %s169 = scalar_lea.hbm %s0, %s168
          %s170 = sshll.u32 %s162, 4
          %s171 = int_to_ptr.vmem [resolvable:$true] %s170
          %176 = dma.hbm_to_vmem [thread:$0]  %s169, 512, %s171, %s159, 128, 128, 8
        $region28: #{tpu_custom_call.1} parent=23 // pred_fallthru
          _
      $region24: #{tpu_custom_call.1} parent=5 // pred_fallthru
        _
      %p177 = scmp.le.s32.totalorder 1, %s16
      %p178 = scmp.lt.s32.totalorder %s16, 5
      %p179 = pnand %p177, %p178
      %p180 = pneg %p179
      // Predicated region
      $region29: #{tpu_custom_call.1} parent=5 // pred_check
        _
      $region30: #{tpu_custom_call.1} parent=5 // pred_check_branch
        %182 = sbr.rel (%p179) target = $region32
      $region31: #{tpu_custom_call.1} parent=5 // pred_region
        %s183 = ssub.s32 %s16, 1
        %s184 = sand.u32 %s29, 1
        %s185 = scalar_lea.sflag [#allocation4], %s184
        %s186 = sand.u32 %s29, 1
        %s187 = smul.addr %s186, 32
        %s188 = scalar_lea.vmem [#allocation3], %s187
        // Predicated region
        $region33: #{tpu_custom_call.1} parent=31 // pred_check
          %p189 = pneg %p42
        $region34: #{tpu_custom_call.1} parent=31 // pred_check_branch
          %191 = sbr.rel (%p189) target = $region36
        $region35: #{tpu_custom_call.1} parent=31 // pred_region
          %192 = dma.done %s185, 512
        $region36: #{tpu_custom_call.1} parent=31 // pred_fallthru
          _
        // Predicated region
        $region37: #{tpu_custom_call.1} parent=31 // pred_check
          %p193 = pneg %p63
        $region38: #{tpu_custom_call.1} parent=31 // pred_check_branch
          %195 = sbr.rel (%p193) target = $region40
        $region39: #{tpu_custom_call.1} parent=31 // pred_region
          %196 = dma.done [#allocation7], 256
        $region40: #{tpu_custom_call.1} parent=31 // pred_fallthru
          _
        // Predicated region
        $region41: #{tpu_custom_call.1} parent=31 // pred_check
          %p197 = pneg %p84
        $region42: #{tpu_custom_call.1} parent=31 // pred_check_branch
          %199 = sbr.rel (%p197) target = $region44
        $region43: #{tpu_custom_call.1} parent=31 // pred_region
          %200 = dma.done [#allocation7], 256
        $region44: #{tpu_custom_call.1} parent=31 // pred_fallthru
          _
        %s201 = sand.u32 %s29, 1
        %s202 = scalar_lea.sflag [#allocation4], %s201
        %s203 = sand.u32 %s29, 1
        %s204 = smul.addr %s203, 32
        %s205 = scalar_lea.vmem [#allocation3], %s204
        %p206 = pneg %p42
        %p207 = pneg %p39
        %p208 = pneg %p63
        %p209 = pneg %p60
        %p210 = pneg %p84
        %p211 = pneg %p81
        %p212 = pneg %p110
        %p213 = pneg %p107
        %s214 = sand.u32 %s97, 1
        %s215 = scalar_lea.sflag [#allocation5], %s214
        %s216 = sand.u32 %s97, 1
        %s217 = smul.addr %s216, 32
        %s218 = scalar_lea.vmem [#allocation9], %s217
        %s219 = smul.u32 2, %s21
        %s220 = smul.u32 2, %s21
        %v221 = vld [vmem:[%s188] sm:$0xff]
        %v222 = vld [vmem:[%s188 + $0x8] sm:$0xff]
        %v223 = vld [vmem:[%s188 + $0x10] sm:$0xff]
        %v224 = vld [vmem:[%s188 + $0x18] sm:$0xff]
        %v225 = vld [vmem:[#allocation8] sm:$0xff]
        %v226 = vld [vmem:[#allocation8 + $0x8] sm:$0xff]
        %vm227 = vcmask 130048
        %v229 = vsel %vm227, %v221, 0
        %v232 = vsel %vm227, %v222, 0
        %v235 = vsel %vm227, %v223, 0
        %v238 = vsel %vm227, %v224, 0
        %240 = vmatprep.subr.mxu0 0.0
        %v241 = vand.u32 %v225, 4294901760
        %242 = vmatpush1.msra.mxu0 %v241
        %243 = vmatprep.subr.mxu0 0.0
        %v244 = vand.u32 %v226, 4294901760
        %245 = vmatpush1.msra.mxu0 %v244
        %246 = vmatprep.subr.mxu0 0.0
        %247 = vmatpush1.msra.mxu0 0.0
        %248 = vmatprep.subr.mxu0 0.0
        %249 = vmatpush1.msra.mxu0 0.0
        %250 = vmatprep.subr.mxu0 0.0
        %251 = vmatpush1.msra.mxu0 0.0
        %252 = vmatprep.subr.mxu0 0.0
        %253 = vmatpush1.msra.mxu0 0.0
        %254 = vmatprep.subr.mxu0 0.0
        %255 = vmatpush1.msra.mxu0 0.0
        %256 = vmatprep.subr.mxu0 0.0
        %257 = vmatpush1.msra.mxu0 0.0
        %258 = vmatprep.subr.mxu0 0.0
        %259 = vmatpush1.msra.mxu0 0.0
        %260 = vmatprep.subr.mxu0 0.0
        %261 = vmatpush1.msra.mxu0 0.0
        %262 = vmatprep.subr.mxu0 0.0
        %263 = vmatpush1.msra.mxu0 0.0
        %264 = vmatprep.subr.mxu0 0.0
        %265 = vmatpush1.msra.mxu0 0.0
        %266 = vmatprep.subr.mxu0 0.0
        %267 = vmatpush1.msra.mxu0 0.0
        %268 = vmatprep.subr.mxu0 0.0
        %269 = vmatpush1.msra.mxu0 0.0
        %270 = vmatprep.subr.mxu0 0.0
        %271 = vmatpush1.msra.mxu0 0.0
        %272 = vmatprep.subr.mxu0 0.0
        %273 = vmatpush1.msra.mxu0 0.0
        %274 = vmatprep.subr.mxu0 0.0
        %275 = vmatpush1.msra.mxu0 0.0
        %276 = vmatprep.subr.mxu0 0.0
        %277 = vmatpush1.msra.mxu0 0.0
        %278 = vmatprep.subr.mxu0 0.0
        %279 = vmatpush1.msra.mxu0 0.0
        %280 = vmatprep.subr.mxu0 0.0
        %281 = vmatpush1.msra.mxu0 0.0
        %282 = vmatprep.subr.mxu0 0.0
        %283 = vmatpush1.msra.mxu0 0.0
        %284 = vmatprep.subr.mxu0 0.0
        %285 = vmatpush1.msra.mxu0 0.0
        %286 = vmatprep.subr.mxu0 0.0
        %287 = vmatpush1.msra.mxu0 0.0
        %288 = vmatprep.subr.mxu0 0.0
        %289 = vmatpush1.msra.mxu0 0.0
        %290 = vmatprep.subr.mxu0 0.0
        %291 = vmatpush1.msra.mxu0 0.0
        %292 = vmatprep.subr.mxu0 0.0
        %293 = vmatpush1.msra.mxu0 0.0
        %294 = vmatprep.subr.mxu0 0.0
        %295 = vmatpush1.msra.mxu0 0.0
        %296 = vmatprep.subr.mxu0 0.0
        %297 = vmatpush1.msra.mxu0 0.0
        %298 = vmatprep.subr.mxu0 0.0
        %299 = vmatpush1.msra.mxu0 0.0
        %300 = vmatprep.subr.mxu0 0.0
        %301 = vmatpush1.msra.mxu0 0.0
        %302 = vmatprep.subr.mxu0 0.0
        %303 = vmatpush1.msra.mxu0 0.0
        %304 = vmatprep.subr.mxu0 0.0
        %305 = vmatpush1.msra.mxu0 0.0
        %306 = vmatprep.mubr.f32.mxu0 0.0
        %v307 = vand.u32 %v229, 4294901760
        %v308 = vsub.f32 %v229, %v307
        %v309 = vand.u32 %v308, 4294901760
        %v310 = vsub.f32 %v308, %v309
        %v311 = vand.u32 %v310, 4294901760
        %312 = vmatmul.mubr.f32.gmra.mrb[0].mxu0 %v311
        %v313 = vpop.f32.mrb[0].mxu0
        %v314 = vadd.f32 0.0, %v313
        %v315 = vpop.f32.mrb[0].mxu0
        %316 = vmatprep.mubr.f32.mxu0 0.0
        %v317 = vand.u32 %v232, 4294901760
        %v318 = vsub.f32 %v232, %v317
        %v319 = vand.u32 %v318, 4294901760
        %v320 = vsub.f32 %v318, %v319
        %v321 = vand.u32 %v320, 4294901760
        %322 = vmatmul.mubr.f32.gmra.mrb[0].mxu0 %v321
        %v323 = vpop.f32.mrb[0].mxu0
        %v324 = vadd.f32 0.0, %v323
        %v325 = vpop.f32.mrb[0].mxu0
        %326 = vmatprep.mubr.f32.mxu0 0.0
        %v327 = vand.u32 %v235, 4294901760
        %v328 = vsub.f32 %v235, %v327
        %v329 = vand.u32 %v328, 4294901760
        %v330 = vsub.f32 %v328, %v329
        %v331 = vand.u32 %v330, 4294901760
        %332 = vmatmul.mubr.f32.gmra.mrb[0].mxu0 %v331
        %v333 = vpop.f32.mrb[0].mxu0
        %v334 = vadd.f32 0.0, %v333
        %v335 = vpop.f32.mrb[0].mxu0
        %336 = vmatprep.mubr.f32.mxu0 0.0
        %v337 = vand.u32 %v238, 4294901760
        %v338 = vsub.f32 %v238, %v337
        %v339 = vand.u32 %v338, 4294901760
        %v340 = vsub.f32 %v338, %v339
        %v341 = vand.u32 %v340, 4294901760
        %342 = vmatmul.mubr.f32.gmra.mrb[0].mxu0 %v341
        %v343 = vpop.f32.mrb[0].mxu0
        %v344 = vadd.f32 0.0, %v343
        %v345 = vpop.f32.mrb[0].mxu0
        %346 = vdwg.mxu0
        %347 = vmatprep.subr.mxu0 0.0
        %v348 = vand.u32 %v225, 4294901760
        %v349 = vsub.f32 %v225, %v348
        %v350 = vand.u32 %v349, 4294901760
        %v351 = vsub.f32 %v349, %v350
        %v352 = vand.u32 %v351, 4294901760
        %353 = vmatpush1.msra.mxu0 %v352
        %354 = vmatprep.subr.mxu0 0.0
        %v355 = vand.u32 %v226, 4294901760
        %v356 = vsub.f32 %v226, %v355
        %v357 = vand.u32 %v356, 4294901760
        %v358 = vsub.f32 %v356, %v357
        %v359 = vand.u32 %v358, 4294901760
        %360 = vmatpush1.msra.mxu0 %v359
        %361 = vmatprep.subr.mxu0 0.0
        %362 = vmatpush1.msra.mxu0 0.0
        %363 = vmatprep.subr.mxu0 0.0
        %364 = vmatpush1.msra.mxu0 0.0
        %365 = vmatprep.subr.mxu0 0.0
        %366 = vmatpush1.msra.mxu0 0.0
        %367 = vmatprep.subr.mxu0 0.0
        %368 = vmatpush1.msra.mxu0 0.0
        %369 = vmatprep.subr.mxu0 0.0
        %370 = vmatpush1.msra.mxu0 0.0
        %371 = vmatprep.subr.mxu0 0.0
        %372 = vmatpush1.msra.mxu0 0.0
        %373 = vmatprep.subr.mxu0 0.0
        %374 = vmatpush1.msra.mxu0 0.0
        %375 = vmatprep.subr.mxu0 0.0
        %376 = vmatpush1.msra.mxu0 0.0
        %377 = vmatprep.subr.mxu0 0.0
        %378 = vmatpush1.msra.mxu0 0.0
        %379 = vmatprep.subr.mxu0 0.0
        %380 = vmatpush1.msra.mxu0 0.0
        %381 = vmatprep.subr.mxu0 0.0
        %382 = vmatpush1.msra.mxu0 0.0
        %383 = vmatprep.subr.mxu0 0.0
        %384 = vmatpush1.msra.mxu0 0.0
        %385 = vmatprep.subr.mxu0 0.0
        %386 = vmatpush1.msra.mxu0 0.0
        %387 = vmatprep.subr.mxu0 0.0
        %388 = vmatpush1.msra.mxu0 0.0
        %389 = vmatprep.subr.mxu0 0.0
        %390 = vmatpush1.msra.mxu0 0.0
        %391 = vmatprep.subr.mxu0 0.0
        %392 = vmatpush1.msra.mxu0 0.0
        %393 = vmatprep.subr.mxu0 0.0
        %394 = vmatpush1.msra.mxu0 0.0
        %395 = vmatprep.subr.mxu0 0.0
        %396 = vmatpush1.msra.mxu0 0.0
        %397 = vmatprep.subr.mxu0 0.0
        %398 = vmatpush1.msra.mxu0 0.0
        %399 = vmatprep.subr.mxu0 0.0
        %400 = vmatpush1.msra.mxu0 0.0
        %401 = vmatprep.subr.mxu0 0.0
        %402 = vmatpush1.msra.mxu0 0.0
        %403 = vmatprep.subr.mxu0 0.0
        %404 = vmatpush1.msra.mxu0 0.0
        %405 = vmatprep.subr.mxu0 0.0
        %406 = vmatpush1.msra.mxu0 0.0
        %407 = vmatprep.subr.mxu0 0.0
        %408 = vmatpush1.msra.mxu0 0.0
        %409 = vmatprep.subr.mxu0 0.0
        %410 = vmatpush1.msra.mxu0 0.0
        %411 = vmatprep.subr.mxu0 0.0
        %412 = vmatpush1.msra.mxu0 0.0
        %413 = vmatprep.subr.mxu0 0.0
        %414 = vmatpush1.msra.mxu0 0.0
        %415 = vmatprep.subr.mxu0 0.0
        %416 = vmatpush1.msra.mxu0 0.0
        %417 = vmatprep.subr.mxu0 0.0
        %418 = vmatpush1.msra.mxu0 0.0
        %419 = vmatprep.subr.mxu0 0.0
        %420 = vmatpush1.msra.mxu0 0.0
        %421 = vmatprep.mubr.f32.mxu0 0.0
        %v422 = vand.u32 %v229, 4294901760
        %423 = vmatmul.mubr.f32.gmra.mrb[0].mxu0 %v422
        %v424 = vpop.f32.mrb[0].mxu0
        %v425 = vadd.f32 %v314, %v424
        %v426 = vpop.f32.mrb[0].mxu0
        %427 = vmatprep.mubr.f32.mxu0 0.0
        %v428 = vand.u32 %v232, 4294901760
        %429 = vmatmul.mubr.f32.gmra.mrb[0].mxu0 %v428
        %v430 = vpop.f32.mrb[0].mxu0
        %v431 = vadd.f32 %v324, %v430
        %v432 = vpop.f32.mrb[0].mxu0
        %433 = vmatprep.mubr.f32.mxu0 0.0
        %v434 = vand.u32 %v235, 4294901760
        %435 = vmatmul.mubr.f32.gmra.mrb[0].mxu0 %v434
        %v436 = vpop.f32.mrb[0].mxu0
        %v437 = vadd.f32 %v334, %v436
        %v438 = vpop.f32.mrb[0].mxu0
        %439 = vmatprep.mubr.f32.mxu0 0.0
        %v440 = vand.u32 %v238, 4294901760
        %441 = vmatmul.mubr.f32.gmra.mrb[0].mxu0 %v440
        %v442 = vpop.f32.mrb[0].mxu0
        %v443 = vadd.f32 %v344, %v442
        %v444 = vpop.f32.mrb[0].mxu0
        %445 = vdwg.mxu0
        %446 = vmatprep.subr.mxu0 0.0
        %v447 = vand.u32 %v225, 4294901760
        %v448 = vsub.f32 %v225, %v447
        %449 = vmatpush1.msra.mxu0 %v448
        %450 = vmatprep.subr.mxu0 0.0
        %v451 = vand.u32 %v226, 4294901760
        %v452 = vsub.f32 %v226, %v451
        %453 = vmatpush1.msra.mxu0 %v452
        %454 = vmatprep.subr.mxu0 0.0
        %455 = vmatpush1.msra.mxu0 0.0
        %456 = vmatprep.subr.mxu0 0.0
        %457 = vmatpush1.msra.mxu0 0.0
        %458 = vmatprep.subr.mxu0 0.0
        %459 = vmatpush1.msra.mxu0 0.0
        %460 = vmatprep.subr.mxu0 0.0
        %461 = vmatpush1.msra.mxu0 0.0
        %462 = vmatprep.subr.mxu0 0.0
        %463 = vmatpush1.msra.mxu0 0.0
        %464 = vmatprep.subr.mxu0 0.0
        %465 = vmatpush1.msra.mxu0 0.0
        %466 = vmatprep.subr.mxu0 0.0
        %467 = vmatpush1.msra.mxu0 0.0
        %468 = vmatprep.subr.mxu0 0.0
        %469 = vmatpush1.msra.mxu0 0.0
        %470 = vmatprep.subr.mxu0 0.0
        %471 = vmatpush1.msra.mxu0 0.0
        %472 = vmatprep.subr.mxu0 0.0
        %473 = vmatpush1.msra.mxu0 0.0
        %474 = vmatprep.subr.mxu0 0.0
        %475 = vmatpush1.msra.mxu0 0.0
        %476 = vmatprep.subr.mxu0 0.0
        %477 = vmatpush1.msra.mxu0 0.0
        %478 = vmatprep.subr.mxu0 0.0
        %479 = vmatpush1.msra.mxu0 0.0
        %480 = vmatprep.subr.mxu0 0.0
        %481 = vmatpush1.msra.mxu0 0.0
        %482 = vmatprep.subr.mxu0 0.0
        %483 = vmatpush1.msra.mxu0 0.0
        %484 = vmatprep.subr.mxu0 0.0
        %485 = vmatpush1.msra.mxu0 0.0
        %486 = vmatprep.subr.mxu0 0.0
        %487 = vmatpush1.msra.mxu0 0.0
        %488 = vmatprep.subr.mxu0 0.0
        %489 = vmatpush1.msra.mxu0 0.0
        %490 = vmatprep.subr.mxu0 0.0
        %491 = vmatpush1.msra.mxu0 0.0
        %492 = vmatprep.subr.mxu0 0.0
        %493 = vmatpush1.msra.mxu0 0.0
        %494 = vmatprep.subr.mxu0 0.0
        %495 = vmatpush1.msra.mxu0 0.0
        %496 = vmatprep.subr.mxu0 0.0
        %497 = vmatpush1.msra.mxu0 0.0
        %498 = vmatprep.subr.mxu0 0.0
        %499 = vmatpush1.msra.mxu0 0.0
        %500 = vmatprep.subr.mxu0 0.0
        %501 = vmatpush1.msra.mxu0 0.0
        %502 = vmatprep.subr.mxu0 0.0
        %503 = vmatpush1.msra.mxu0 0.0
        %504 = vmatprep.subr.mxu0 0.0
        %505 = vmatpush1.msra.mxu0 0.0
        %506 = vmatprep.subr.mxu0 0.0
        %507 = vmatpush1.msra.mxu0 0.0
        %508 = vmatprep.subr.mxu0 0.0
        %509 = vmatpush1.msra.mxu0 0.0
        %510 = vmatprep.subr.mxu0 0.0
        %511 = vmatpush1.msra.mxu0 0.0
        %512 = vmatprep.subr.mxu0 0.0
        %513 = vmatpush1.msra.mxu0 0.0
        %514 = vmatprep.mubr.f32.mxu0 0.0
        %v515 = vand.u32 %v229, 4294901760
        %v516 = vsub.f32 %v229, %v515
        %517 = vmatmul.mubr.f32.gmra.mrb[0].mxu0 %v516
        %v518 = vpop.f32.mrb[0].mxu0
        %v519 = vadd.f32 %v425, %v518
        %v520 = vpop.f32.mrb[0].mxu0
        %521 = vmatprep.mubr.f32.mxu0 0.0
        %v522 = vand.u32 %v232, 4294901760
        %v523 = vsub.f32 %v232, %v522
        %524 = vmatmul.mubr.f32.gmra.mrb[0].mxu0 %v523
        %v525 = vpop.f32.mrb[0].mxu0
        %v526 = vadd.f32 %v431, %v525
        %v527 = vpop.f32.mrb[0].mxu0
        %528 = vmatprep.mubr.f32.mxu0 0.0
        %v529 = vand.u32 %v235, 4294901760
        %v530 = vsub.f32 %v235, %v529
        %531 = vmatmul.mubr.f32.gmra.mrb[0].mxu0 %v530
        %v532 = vpop.f32.mrb[0].mxu0
        %v533 = vadd.f32 %v437, %v532
        %v534 = vpop.f32.mrb[0].mxu0
        %535 = vmatprep.mubr.f32.mxu0 0.0
        %v536 = vand.u32 %v238, 4294901760
        %v537 = vsub.f32 %v238, %v536
        %538 = vmatmul.mubr.f32.gmra.mrb[0].mxu0 %v537
        %v539 = vpop.f32.mrb[0].mxu0
        %v540 = vadd.f32 %v443, %v539
        %v541 = vpop.f32.mrb[0].mxu0
        %542 = vdwg.mxu0
        %543 = vmatprep.subr.mxu0 0.0
        %v544 = vand.u32 %v225, 4294901760
        %545 = vmatpush1.msra.mxu0 %v544
        %546 = vmatprep.subr.mxu0 0.0
        %v547 = vand.u32 %v226, 4294901760
        %548 = vmatpush1.msra.mxu0 %v547
        %549 = vmatprep.subr.mxu0 0.0
        %550 = vmatpush1.msra.mxu0 0.0
        %551 = vmatprep.subr.mxu0 0.0
        %552 = vmatpush1.msra.mxu0 0.0
        %553 = vmatprep.subr.mxu0 0.0
        %554 = vmatpush1.msra.mxu0 0.0
        %555 = vmatprep.subr.mxu0 0.0
        %556 = vmatpush1.msra.mxu0 0.0
        %557 = vmatprep.subr.mxu0 0.0
        %558 = vmatpush1.msra.mxu0 0.0
        %559 = vmatprep.subr.mxu0 0.0
        %560 = vmatpush1.msra.mxu0 0.0
        %561 = vmatprep.subr.mxu0 0.0
        %562 = vmatpush1.msra.mxu0 0.0
        %563 = vmatprep.subr.mxu0 0.0
        %564 = vmatpush1.msra.mxu0 0.0
        %565 = vmatprep.subr.mxu0 0.0
        %566 = vmatpush1.msra.mxu0 0.0
        %567 = vmatprep.subr.mxu0 0.0
        %568 = vmatpush1.msra.mxu0 0.0
        %569 = vmatprep.subr.mxu0 0.0
        %570 = vmatpush1.msra.mxu0 0.0
        %571 = vmatprep.subr.mxu0 0.0
        %572 = vmatpush1.msra.mxu0 0.0
        %573 = vmatprep.subr.mxu0 0.0
        %574 = vmatpush1.msra.mxu0 0.0
        %575 = vmatprep.subr.mxu0 0.0
        %576 = vmatpush1.msra.mxu0 0.0
        %577 = vmatprep.subr.mxu0 0.0
        %578 = vmatpush1.msra.mxu0 0.0
        %579 = vmatprep.subr.mxu0 0.0
        %580 = vmatpush1.msra.mxu0 0.0
        %581 = vmatprep.subr.mxu0 0.0
        %582 = vmatpush1.msra.mxu0 0.0
        %583 = vmatprep.subr.mxu0 0.0
        %584 = vmatpush1.msra.mxu0 0.0
        %585 = vmatprep.subr.mxu0 0.0
        %586 = vmatpush1.msra.mxu0 0.0
        %587 = vmatprep.subr.mxu0 0.0
        %588 = vmatpush1.msra.mxu0 0.0
        %589 = vmatprep.subr.mxu0 0.0
        %590 = vmatpush1.msra.mxu0 0.0
        %591 = vmatprep.subr.mxu0 0.0
        %592 = vmatpush1.msra.mxu0 0.0
        %593 = vmatprep.subr.mxu0 0.0
        %594 = vmatpush1.msra.mxu0 0.0
        %595 = vmatprep.subr.mxu0 0.0
        %596 = vmatpush1.msra.mxu0 0.0
        %597 = vmatprep.subr.mxu0 0.0
        %598 = vmatpush1.msra.mxu0 0.0
        %599 = vmatprep.subr.mxu0 0.0
        %600 = vmatpush1.msra.mxu0 0.0
        %601 = vmatprep.subr.mxu0 0.0
        %602 = vmatpush1.msra.mxu0 0.0
        %603 = vmatprep.subr.mxu0 0.0
        %604 = vmatpush1.msra.mxu0 0.0
        %605 = vmatprep.subr.mxu0 0.0
        %606 = vmatpush1.msra.mxu0 0.0
        %607 = vmatprep.subr.mxu0 0.0
        %608 = vmatpush1.msra.mxu0 0.0
        %609 = vmatprep.mubr.f32.mxu0 0.0
        %v610 = vand.u32 %v229, 4294901760
        %v611 = vsub.f32 %v229, %v610
        %v612 = vand.u32 %v611, 4294901760
        %613 = vmatmul.mubr.f32.gmra.mrb[0].mxu0 %v612
        %v614 = vpop.f32.mrb[0].mxu0
        %v615 = vadd.f32 %v519, %v614
        %v616 = vpop.f32.mrb[0].mxu0
        %617 = vmatprep.mubr.f32.mxu0 0.0
        %v618 = vand.u32 %v232, 4294901760
        %v619 = vsub.f32 %v232, %v618
        %v620 = vand.u32 %v619, 4294901760
        %621 = vmatmul.mubr.f32.gmra.mrb[0].mxu0 %v620
        %v622 = vpop.f32.mrb[0].mxu0
        %v623 = vadd.f32 %v526, %v622
        %v624 = vpop.f32.mrb[0].mxu0
        %625 = vmatprep.mubr.f32.mxu0 0.0
        %v626 = vand.u32 %v235, 4294901760
        %v627 = vsub.f32 %v235, %v626
        %v628 = vand.u32 %v627, 4294901760
        %629 = vmatmul.mubr.f32.gmra.mrb[0].mxu0 %v628
        %v630 = vpop.f32.mrb[0].mxu0
        %v631 = vadd.f32 %v533, %v630
        %v632 = vpop.f32.mrb[0].mxu0
        %633 = vmatprep.mubr.f32.mxu0 0.0
        %v634 = vand.u32 %v238, 4294901760
        %v635 = vsub.f32 %v238, %v634
        %v636 = vand.u32 %v635, 4294901760
        %637 = vmatmul.mubr.f32.gmra.mrb[0].mxu0 %v636
        %v638 = vpop.f32.mrb[0].mxu0
        %v639 = vadd.f32 %v540, %v638
        %v640 = vpop.f32.mrb[0].mxu0
        %641 = vdwg.mxu0
        %642 = vmatprep.subr.mxu0 0.0
        %v643 = vand.u32 %v225, 4294901760
        %v644 = vsub.f32 %v225, %v643
        %v645 = vand.u32 %v644, 4294901760
        %646 = vmatpush1.msra.mxu0 %v645
        %647 = vmatprep.subr.mxu0 0.0
        %v648 = vand.u32 %v226, 4294901760
        %v649 = vsub.f32 %v226, %v648
        %v650 = vand.u32 %v649, 4294901760
        %651 = vmatpush1.msra.mxu0 %v650
        %652 = vmatprep.subr.mxu0 0.0
        %653 = vmatpush1.msra.mxu0 0.0
        %654 = vmatprep.subr.mxu0 0.0
        %655 = vmatpush1.msra.mxu0 0.0
        %656 = vmatprep.subr.mxu0 0.0
        %657 = vmatpush1.msra.mxu0 0.0
        %658 = vmatprep.subr.mxu0 0.0
        %659 = vmatpush1.msra.mxu0 0.0
        %660 = vmatprep.subr.mxu0 0.0
        %661 = vmatpush1.msra.mxu0 0.0
        %662 = vmatprep.subr.mxu0 0.0
        %663 = vmatpush1.msra.mxu0 0.0
        %664 = vmatprep.subr.mxu0 0.0
        %665 = vmatpush1.msra.mxu0 0.0
        %666 = vmatprep.subr.mxu0 0.0
        %667 = vmatpush1.msra.mxu0 0.0
        %668 = vmatprep.subr.mxu0 0.0
        %669 = vmatpush1.msra.mxu0 0.0
        %670 = vmatprep.subr.mxu0 0.0
        %671 = vmatpush1.msra.mxu0 0.0
        %672 = vmatprep.subr.mxu0 0.0
        %673 = vmatpush1.msra.mxu0 0.0
        %674 = vmatprep.subr.mxu0 0.0
        %675 = vmatpush1.msra.mxu0 0.0
        %676 = vmatprep.subr.mxu0 0.0
        %677 = vmatpush1.msra.mxu0 0.0
        %678 = vmatprep.subr.mxu0 0.0
        %679 = vmatpush1.msra.mxu0 0.0
        %680 = vmatprep.subr.mxu0 0.0
        %681 = vmatpush1.msra.mxu0 0.0
        %682 = vmatprep.subr.mxu0 0.0
        %683 = vmatpush1.msra.mxu0 0.0
        %684 = vmatprep.subr.mxu0 0.0
        %685 = vmatpush1.msra.mxu0 0.0
        %686 = vmatprep.subr.mxu0 0.0
        %687 = vmatpush1.msra.mxu0 0.0
        %688 = vmatprep.subr.mxu0 0.0
        %689 = vmatpush1.msra.mxu0 0.0
        %690 = vmatprep.subr.mxu0 0.0
        %691 = vmatpush1.msra.mxu0 0.0
        %692 = vmatprep.subr.mxu0 0.0
        %693 = vmatpush1.msra.mxu0 0.0
        %694 = vmatprep.subr.mxu0 0.0
        %695 = vmatpush1.msra.mxu0 0.0
        %696 = vmatprep.subr.mxu0 0.0
        %697 = vmatpush1.msra.mxu0 0.0
        %698 = vmatprep.subr.mxu0 0.0
        %699 = vmatpush1.msra.mxu0 0.0
        %700 = vmatprep.subr.mxu0 0.0
        %701 = vmatpush1.msra.mxu0 0.0
        %702 = vmatprep.subr.mxu0 0.0
        %703 = vmatpush1.msra.mxu0 0.0
        %704 = vmatprep.subr.mxu0 0.0
        %705 = vmatpush1.msra.mxu0 0.0
        %706 = vmatprep.subr.mxu0 0.0
        %707 = vmatpush1.msra.mxu0 0.0
        %708 = vmatprep.subr.mxu0 0.0
        %709 = vmatpush1.msra.mxu0 0.0
        %710 = vmatprep.subr.mxu0 0.0
        %711 = vmatpush1.msra.mxu0 0.0
        %712 = vmatprep.mubr.f32.mxu0 0.0
        %v713 = vand.u32 %v229, 4294901760
        %714 = vmatmul.mubr.f32.gmra.mrb[0].mxu0 %v713
        %v715 = vpop.f32.mrb[0].mxu0
        %v716 = vadd.f32 %v615, %v715
        %v717 = vpop.f32.mrb[0].mxu0
        %718 = vmatprep.mubr.f32.mxu0 0.0
        %v719 = vand.u32 %v232, 4294901760
        %720 = vmatmul.mubr.f32.gmra.mrb[0].mxu0 %v719
        %v721 = vpop.f32.mrb[0].mxu0
        %v722 = vadd.f32 %v623, %v721
        %v723 = vpop.f32.mrb[0].mxu0
        %724 = vmatprep.mubr.f32.mxu0 0.0
        %v725 = vand.u32 %v235, 4294901760
        %726 = vmatmul.mubr.f32.gmra.mrb[0].mxu0 %v725
        %v727 = vpop.f32.mrb[0].mxu0
        %v728 = vadd.f32 %v631, %v727
        %v729 = vpop.f32.mrb[0].mxu0
        %730 = vmatprep.mubr.f32.mxu0 0.0
        %v731 = vand.u32 %v238, 4294901760
        %732 = vmatmul.mubr.f32.gmra.mrb[0].mxu0 %v731
        %v733 = vpop.f32.mrb[0].mxu0
        %v734 = vadd.f32 %v639, %v733
        %v735 = vpop.f32.mrb[0].mxu0
        %736 = vdwg.mxu0
        %737 = vmatprep.subr.mxu0 0.0
        %v738 = vand.u32 %v225, 4294901760
        %739 = vmatpush1.msra.mxu0 %v738
        %740 = vmatprep.subr.mxu0 0.0
        %v741 = vand.u32 %v226, 4294901760
        %742 = vmatpush1.msra.mxu0 %v741
        %743 = vmatprep.subr.mxu0 0.0
        %744 = vmatpush1.msra.mxu0 0.0
        %745 = vmatprep.subr.mxu0 0.0
        %746 = vmatpush1.msra.mxu0 0.0
        %747 = vmatprep.subr.mxu0 0.0
        %748 = vmatpush1.msra.mxu0 0.0
        %749 = vmatprep.subr.mxu0 0.0
        %750 = vmatpush1.msra.mxu0 0.0
        %751 = vmatprep.subr.mxu0 0.0
        %752 = vmatpush1.msra.mxu0 0.0
        %753 = vmatprep.subr.mxu0 0.0
        %754 = vmatpush1.msra.mxu0 0.0
        %755 = vmatprep.subr.mxu0 0.0
        %756 = vmatpush1.msra.mxu0 0.0
        %757 = vmatprep.subr.mxu0 0.0
        %758 = vmatpush1.msra.mxu0 0.0
        %759 = vmatprep.subr.mxu0 0.0
        %760 = vmatpush1.msra.mxu0 0.0
        %761 = vmatprep.subr.mxu0 0.0
        %762 = vmatpush1.msra.mxu0 0.0
        %763 = vmatprep.subr.mxu0 0.0
        %764 = vmatpush1.msra.mxu0 0.0
        %765 = vmatprep.subr.mxu0 0.0
        %766 = vmatpush1.msra.mxu0 0.0
        %767 = vmatprep.subr.mxu0 0.0
        %768 = vmatpush1.msra.mxu0 0.0
        %769 = vmatprep.subr.mxu0 0.0
        %770 = vmatpush1.msra.mxu0 0.0
        %771 = vmatprep.subr.mxu0 0.0
        %772 = vmatpush1.msra.mxu0 0.0
        %773 = vmatprep.subr.mxu0 0.0
        %774 = vmatpush1.msra.mxu0 0.0
        %775 = vmatprep.subr.mxu0 0.0
        %776 = vmatpush1.msra.mxu0 0.0
        %777 = vmatprep.subr.mxu0 0.0
        %778 = vmatpush1.msra.mxu0 0.0
        %779 = vmatprep.subr.mxu0 0.0
        %780 = vmatpush1.msra.mxu0 0.0
        %781 = vmatprep.subr.mxu0 0.0
        %782 = vmatpush1.msra.mxu0 0.0
        %783 = vmatprep.subr.mxu0 0.0
        %784 = vmatpush1.msra.mxu0 0.0
        %785 = vmatprep.subr.mxu0 0.0
        %786 = vmatpush1.msra.mxu0 0.0
        %787 = vmatprep.subr.mxu0 0.0
        %788 = vmatpush1.msra.mxu0 0.0
        %789 = vmatprep.subr.mxu0 0.0
        %790 = vmatpush1.msra.mxu0 0.0
        %791 = vmatprep.subr.mxu0 0.0
        %792 = vmatpush1.msra.mxu0 0.0
        %793 = vmatprep.subr.mxu0 0.0
        %794 = vmatpush1.msra.mxu0 0.0
        %795 = vmatprep.subr.mxu0 0.0
        %796 = vmatpush1.msra.mxu0 0.0
        %797 = vmatprep.subr.mxu0 0.0
        %798 = vmatpush1.msra.mxu0 0.0
        %799 = vmatprep.subr.mxu0 0.0
        %800 = vmatpush1.msra.mxu0 0.0
        %801 = vmatprep.subr.mxu0 0.0
        %802 = vmatpush1.msra.mxu0 0.0
        %803 = vmatprep.mubr.f32.mxu0 0.0
        %v804 = vand.u32 %v229, 4294901760
        %805 = vmatmul.mubr.f32.gmra.mrb[0].mxu0 %v804
        %v806 = vpop.f32.mrb[0].mxu0
        %v807 = vadd.f32 %v716, %v806
        %v808 = vpop.f32.mrb[0].mxu0
        %809 = vmatprep.mubr.f32.mxu0 0.0
        %v810 = vand.u32 %v232, 4294901760
        %811 = vmatmul.mubr.f32.gmra.mrb[0].mxu0 %v810
        %v812 = vpop.f32.mrb[0].mxu0
        %v813 = vadd.f32 %v722, %v812
        %v814 = vpop.f32.mrb[0].mxu0
        %815 = vmatprep.mubr.f32.mxu0 0.0
        %v816 = vand.u32 %v235, 4294901760
        %817 = vmatmul.mubr.f32.gmra.mrb[0].mxu0 %v816
        %v818 = vpop.f32.mrb[0].mxu0
        %v819 = vadd.f32 %v728, %v818
        %v820 = vpop.f32.mrb[0].mxu0
        %821 = vmatprep.mubr.f32.mxu0 0.0
        %v822 = vand.u32 %v238, 4294901760
        %823 = vmatmul.mubr.f32.gmra.mrb[0].mxu0 %v822
        %v824 = vpop.f32.mrb[0].mxu0
        %v825 = vadd.f32 %v734, %v824
        %v826 = vpop.f32.mrb[0].mxu0
        %827 = vdwg.mxu0
        %828 = vst.msk [vmem:[#allocation2] sm:$0xff] %vm227, %v807
        %829 = vst.msk [vmem:[#allocation2 + $0x8] sm:$0xff] %vm227, %v813
        %830 = vst.msk [vmem:[#allocation2 + $0x10] sm:$0xff] %vm227, %v819
        %831 = vst.msk [vmem:[#allocation2 + $0x18] sm:$0xff] %vm227, %v825
        %v832 = vld [vmem:[#allocation6] sm:$0xff]
        %v833 = vld [vmem:[#allocation6 + $0x8] sm:$0xff]
        %v834 = vld [vmem:[#allocation2] sm:$0xff]
        %v835 = vld [vmem:[#allocation2 + $0x8] sm:$0xff]
        %v837 = vsel %vm227, %v832, 0
        %v840 = vsel %vm227, %v833, 0
        %842 = vmatprep.subr.mxu0 0.0
        %v843 = vand.u32 %v834, 4294901760
        %844 = vmatpush1.msra.mxu0 %v843
        %845 = vmatprep.subr.mxu0 0.0
        %v846 = vand.u32 %v835, 4294901760
        %847 = vmatpush1.msra.mxu0 %v846
        %848 = vmatprep.subr.mxu0 0.0
        %849 = vmatpush1.msra.mxu0 0.0
        %850 = vmatprep.subr.mxu0 0.0
        %851 = vmatpush1.msra.mxu0 0.0
        %852 = vmatprep.subr.mxu0 0.0
        %853 = vmatpush1.msra.mxu0 0.0
        %854 = vmatprep.subr.mxu0 0.0
        %855 = vmatpush1.msra.mxu0 0.0
        %856 = vmatprep.subr.mxu0 0.0
        %857 = vmatpush1.msra.mxu0 0.0
        %858 = vmatprep.subr.mxu0 0.0
        %859 = vmatpush1.msra.mxu0 0.0
        %860 = vmatprep.subr.mxu0 0.0
        %861 = vmatpush1.msra.mxu0 0.0
        %862 = vmatprep.subr.mxu0 0.0
        %863 = vmatpush1.msra.mxu0 0.0
        %864 = vmatprep.subr.mxu0 0.0
        %865 = vmatpush1.msra.mxu0 0.0
        %866 = vmatprep.subr.mxu0 0.0
        %867 = vmatpush1.msra.mxu0 0.0
        %868 = vmatprep.subr.mxu0 0.0
        %869 = vmatpush1.msra.mxu0 0.0
        %870 = vmatprep.subr.mxu0 0.0
        %871 = vmatpush1.msra.mxu0 0.0
        %872 = vmatprep.subr.mxu0 0.0
        %873 = vmatpush1.msra.mxu0 0.0
        %874 = vmatprep.subr.mxu0 0.0
        %875 = vmatpush1.msra.mxu0 0.0
        %876 = vmatprep.subr.mxu0 0.0
        %877 = vmatpush1.msra.mxu0 0.0
        %878 = vmatprep.subr.mxu0 0.0
        %879 = vmatpush1.msra.mxu0 0.0
        %880 = vmatprep.subr.mxu0 0.0
        %881 = vmatpush1.msra.mxu0 0.0
        %882 = vmatprep.subr.mxu0 0.0
        %883 = vmatpush1.msra.mxu0 0.0
        %884 = vmatprep.subr.mxu0 0.0
        %885 = vmatpush1.msra.mxu0 0.0
        %886 = vmatprep.subr.mxu0 0.0
        %887 = vmatpush1.msra.mxu0 0.0
        %888 = vmatprep.subr.mxu0 0.0
        %889 = vmatpush1.msra.mxu0 0.0
        %890 = vmatprep.subr.mxu0 0.0
        %891 = vmatpush1.msra.mxu0 0.0
        %892 = vmatprep.subr.mxu0 0.0
        %893 = vmatpush1.msra.mxu0 0.0
        %894 = vmatprep.subr.mxu0 0.0
        %895 = vmatpush1.msra.mxu0 0.0
        %896 = vmatprep.subr.mxu0 0.0
        %897 = vmatpush1.msra.mxu0 0.0
        %898 = vmatprep.subr.mxu0 0.0
        %899 = vmatpush1.msra.mxu0 0.0
        %900 = vmatprep.subr.mxu0 0.0
        %901 = vmatpush1.msra.mxu0 0.0
        %902 = vmatprep.subr.mxu0 0.0
        %903 = vmatpush1.msra.mxu0 0.0
        %904 = vmatprep.subr.mxu0 0.0
        %905 = vmatpush1.msra.mxu0 0.0
        %906 = vmatprep.subr.mxu0 0.0
        %907 = vmatpush1.msra.mxu0 0.0
        %908 = vmatprep.mubr.f32.mxu0 0.0
        %v909 = vand.u32 %v837, 4294901760
        %v910 = vsub.f32 %v837, %v909
        %v911 = vand.u32 %v910, 4294901760
        %v912 = vsub.f32 %v910, %v911
        %v913 = vand.u32 %v912, 4294901760
        %914 = vmatmul.mubr.f32.gmra.mrb[0].mxu0 %v913
        %v915 = vpop.f32.mrb[0].mxu0
        %v916 = vadd.f32 0.0, %v915
        %v917 = vpop.f32.mrb[0].mxu0
        %918 = vmatprep.mubr.f32.mxu0 0.0
        %v919 = vand.u32 %v840, 4294901760
        %v920 = vsub.f32 %v840, %v919
        %v921 = vand.u32 %v920, 4294901760
        %v922 = vsub.f32 %v920, %v921
        %v923 = vand.u32 %v922, 4294901760
        %924 = vmatmul.mubr.f32.gmra.mrb[0].mxu0 %v923
        %v925 = vpop.f32.mrb[0].mxu0
        %v926 = vadd.f32 0.0, %v925
        %v927 = vpop.f32.mrb[0].mxu0
        %928 = vdwg.mxu0
        %929 = vmatprep.subr.mxu0 0.0
        %v930 = vand.u32 %v834, 4294901760
        %v931 = vsub.f32 %v834, %v930
        %v932 = vand.u32 %v931, 4294901760
        %v933 = vsub.f32 %v931, %v932
        %v934 = vand.u32 %v933, 4294901760
        %935 = vmatpush1.msra.mxu0 %v934
        %936 = vmatprep.subr.mxu0 0.0
        %v937 = vand.u32 %v835, 4294901760
        %v938 = vsub.f32 %v835, %v937
        %v939 = vand.u32 %v938, 4294901760
        %v940 = vsub.f32 %v938, %v939
        %v941 = vand.u32 %v940, 4294901760
        %942 = vmatpush1.msra.mxu0 %v941
        %943 = vmatprep.subr.mxu0 0.0
        %944 = vmatpush1.msra.mxu0 0.0
        %945 = vmatprep.subr.mxu0 0.0
        %946 = vmatpush1.msra.mxu0 0.0
        %947 = vmatprep.subr.mxu0 0.0
        %948 = vmatpush1.msra.mxu0 0.0
        %949 = vmatprep.subr.mxu0 0.0
        %950 = vmatpush1.msra.mxu0 0.0
        %951 = vmatprep.subr.mxu0 0.0
        %952 = vmatpush1.msra.mxu0 0.0
        %953 = vmatprep.subr.mxu0 0.0
        %954 = vmatpush1.msra.mxu0 0.0
        %955 = vmatprep.subr.mxu0 0.0
        %956 = vmatpush1.msra.mxu0 0.0
        %957 = vmatprep.subr.mxu0 0.0
        %958 = vmatpush1.msra.mxu0 0.0
        %959 = vmatprep.subr.mxu0 0.0
        %960 = vmatpush1.msra.mxu0 0.0
        %961 = vmatprep.subr.mxu0 0.0
        %962 = vmatpush1.msra.mxu0 0.0
        %963 = vmatprep.subr.mxu0 0.0
        %964 = vmatpush1.msra.mxu0 0.0
        %965 = vmatprep.subr.mxu0 0.0
        %966 = vmatpush1.msra.mxu0 0.0
        %967 = vmatprep.subr.mxu0 0.0
        %968 = vmatpush1.msra.mxu0 0.0
        %969 = vmatprep.subr.mxu0 0.0
        %970 = vmatpush1.msra.mxu0 0.0
        %971 = vmatprep.subr.mxu0 0.0
        %972 = vmatpush1.msra.mxu0 0.0
        %973 = vmatprep.subr.mxu0 0.0
        %974 = vmatpush1.msra.mxu0 0.0
        %975 = vmatprep.subr.mxu0 0.0
        %976 = vmatpush1.msra.mxu0 0.0
        %977 = vmatprep.subr.mxu0 0.0
        %978 = vmatpush1.msra.mxu0 0.0
        %979 = vmatprep.subr.mxu0 0.0
        %980 = vmatpush1.msra.mxu0 0.0
        %981 = vmatprep.subr.mxu0 0.0
        %982 = vmatpush1.msra.mxu0 0.0
        %983 = vmatprep.subr.mxu0 0.0
        %984 = vmatpush1.msra.mxu0 0.0
        %985 = vmatprep.subr.mxu0 0.0
        %986 = vmatpush1.msra.mxu0 0.0
        %987 = vmatprep.subr.mxu0 0.0
        %988 = vmatpush1.msra.mxu0 0.0
        %989 = vmatprep.subr.mxu0 0.0
        %990 = vmatpush1.msra.mxu0 0.0
        %991 = vmatprep.subr.mxu0 0.0
        %992 = vmatpush1.msra.mxu0 0.0
        %993 = vmatprep.subr.mxu0 0.0
        %994 = vmatpush1.msra.mxu0 0.0
        %995 = vmatprep.subr.mxu0 0.0
        %996 = vmatpush1.msra.mxu0 0.0
        %997 = vmatprep.subr.mxu0 0.0
        %998 = vmatpush1.msra.mxu0 0.0
        %999 = vmatprep.subr.mxu0 0.0
        %1000 = vmatpush1.msra.mxu0 0.0
        %1001 = vmatprep.subr.mxu0 0.0
        %1002 = vmatpush1.msra.mxu0 0.0
        %1003 = vmatprep.mubr.f32.mxu0 0.0
        %v1004 = vand.u32 %v837, 4294901760
        %1005 = vmatmul.mubr.f32.gmra.mrb[0].mxu0 %v1004
        %v1006 = vpop.f32.mrb[0].mxu0
        %v1007 = vadd.f32 %v916, %v1006
        %v1008 = vpop.f32.mrb[0].mxu0
        %1009 = vmatprep.mubr.f32.mxu0 0.0
        %v1010 = vand.u32 %v840, 4294901760
        %1011 = vmatmul.mubr.f32.gmra.mrb[0].mxu0 %v1010
        %v1012 = vpop.f32.mrb[0].mxu0
        %v1013 = vadd.f32 %v926, %v1012
        %v1014 = vpop.f32.mrb[0].mxu0
        %1015 = vdwg.mxu0
        %1016 = vmatprep.subr.mxu0 0.0
        %v1017 = vand.u32 %v834, 4294901760
        %v1018 = vsub.f32 %v834, %v1017
        %1019 = vmatpush1.msra.mxu0 %v1018
        %1020 = vmatprep.subr.mxu0 0.0
        %v1021 = vand.u32 %v835, 4294901760
        %v1022 = vsub.f32 %v835, %v1021
        %1023 = vmatpush1.msra.mxu0 %v1022
        %1024 = vmatprep.subr.mxu0 0.0
        %1025 = vmatpush1.msra.mxu0 0.0
        %1026 = vmatprep.subr.mxu0 0.0
        %1027 = vmatpush1.msra.mxu0 0.0
        %1028 = vmatprep.subr.mxu0 0.0
        %1029 = vmatpush1.msra.mxu0 0.0
        %1030 = vmatprep.subr.mxu0 0.0
        %1031 = vmatpush1.msra.mxu0 0.0
        %1032 = vmatprep.subr.mxu0 0.0
        %1033 = vmatpush1.msra.mxu0 0.0
        %1034 = vmatprep.subr.mxu0 0.0
        %1035 = vmatpush1.msra.mxu0 0.0
        %1036 = vmatprep.subr.mxu0 0.0
        %1037 = vmatpush1.msra.mxu0 0.0
        %1038 = vmatprep.subr.mxu0 0.0
        %1039 = vmatpush1.msra.mxu0 0.0
        %1040 = vmatprep.subr.mxu0 0.0
        %1041 = vmatpush1.msra.mxu0 0.0
        %1042 = vmatprep.subr.mxu0 0.0
        %1043 = vmatpush1.msra.mxu0 0.0
        %1044 = vmatprep.subr.mxu0 0.0
        %1045 = vmatpush1.msra.mxu0 0.0
        %1046 = vmatprep.subr.mxu0 0.0
        %1047 = vmatpush1.msra.mxu0 0.0
        %1048 = vmatprep.subr.mxu0 0.0
        %1049 = vmatpush1.msra.mxu0 0.0
        %1050 = vmatprep.subr.mxu0 0.0
        %1051 = vmatpush1.msra.mxu0 0.0
        %1052 = vmatprep.subr.mxu0 0.0
        %1053 = vmatpush1.msra.mxu0 0.0
        %1054 = vmatprep.subr.mxu0 0.0
        %1055 = vmatpush1.msra.mxu0 0.0
        %1056 = vmatprep.subr.mxu0 0.0
        %1057 = vmatpush1.msra.mxu0 0.0
        %1058 = vmatprep.subr.mxu0 0.0
        %1059 = vmatpush1.msra.mxu0 0.0
        %1060 = vmatprep.subr.mxu0 0.0
        %1061 = vmatpush1.msra.mxu0 0.0
        %1062 = vmatprep.subr.mxu0 0.0
        %1063 = vmatpush1.msra.mxu0 0.0
        %1064 = vmatprep.subr.mxu0 0.0
        %1065 = vmatpush1.msra.mxu0 0.0
        %1066 = vmatprep.subr.mxu0 0.0
        %1067 = vmatpush1.msra.mxu0 0.0
        %1068 = vmatprep.subr.mxu0 0.0
        %1069 = vmatpush1.msra.mxu0 0.0
        %1070 = vmatprep.subr.mxu0 0.0
        %1071 = vmatpush1.msra.mxu0 0.0
        %1072 = vmatprep.subr.mxu0 0.0
        %1073 = vmatpush1.msra.mxu0 0.0
        %1074 = vmatprep.subr.mxu0 0.0
        %1075 = vmatpush1.msra.mxu0 0.0
        %1076 = vmatprep.subr.mxu0 0.0
        %1077 = vmatpush1.msra.mxu0 0.0
        %1078 = vmatprep.subr.mxu0 0.0
        %1079 = vmatpush1.msra.mxu0 0.0
        %1080 = vmatprep.subr.mxu0 0.0
        %1081 = vmatpush1.msra.mxu0 0.0
        %1082 = vmatprep.subr.mxu0 0.0
        %1083 = vmatpush1.msra.mxu0 0.0
        %1084 = vmatprep.mubr.f32.mxu0 0.0
        %v1085 = vand.u32 %v837, 4294901760
        %v1086 = vsub.f32 %v837, %v1085
        %1087 = vmatmul.mubr.f32.gmra.mrb[0].mxu0 %v1086
        %v1088 = vpop.f32.mrb[0].mxu0
        %v1089 = vadd.f32 %v1007, %v1088
        %v1090 = vpop.f32.mrb[0].mxu0
        %1091 = vmatprep.mubr.f32.mxu0 0.0
        %v1092 = vand.u32 %v840, 4294901760
        %v1093 = vsub.f32 %v840, %v1092
        %1094 = vmatmul.mubr.f32.gmra.mrb[0].mxu0 %v1093
        %v1095 = vpop.f32.mrb[0].mxu0
        %v1096 = vadd.f32 %v1013, %v1095
        %v1097 = vpop.f32.mrb[0].mxu0
        %1098 = vdwg.mxu0
        %1099 = vmatprep.subr.mxu0 0.0
        %v1100 = vand.u32 %v834, 4294901760
        %1101 = vmatpush1.msra.mxu0 %v1100
        %1102 = vmatprep.subr.mxu0 0.0
        %v1103 = vand.u32 %v835, 4294901760
        %1104 = vmatpush1.msra.mxu0 %v1103
        %1105 = vmatprep.subr.mxu0 0.0
        %1106 = vmatpush1.msra.mxu0 0.0
        %1107 = vmatprep.subr.mxu0 0.0
        %1108 = vmatpush1.msra.mxu0 0.0
        %1109 = vmatprep.subr.mxu0 0.0
        %1110 = vmatpush1.msra.mxu0 0.0
        %1111 = vmatprep.subr.mxu0 0.0
        %1112 = vmatpush1.msra.mxu0 0.0
        %1113 = vmatprep.subr.mxu0 0.0
        %1114 = vmatpush1.msra.mxu0 0.0
        %1115 = vmatprep.subr.mxu0 0.0
        %1116 = vmatpush1.msra.mxu0 0.0
        %1117 = vmatprep.subr.mxu0 0.0
        %1118 = vmatpush1.msra.mxu0 0.0
        %1119 = vmatprep.subr.mxu0 0.0
        %1120 = vmatpush1.msra.mxu0 0.0
        %1121 = vmatprep.subr.mxu0 0.0
        %1122 = vmatpush1.msra.mxu0 0.0
        %1123 = vmatprep.subr.mxu0 0.0
        %1124 = vmatpush1.msra.mxu0 0.0
        %1125 = vmatprep.subr.mxu0 0.0
        %1126 = vmatpush1.msra.mxu0 0.0
        %1127 = vmatprep.subr.mxu0 0.0
        %1128 = vmatpush1.msra.mxu0 0.0
        %1129 = vmatprep.subr.mxu0 0.0
        %1130 = vmatpush1.msra.mxu0 0.0
        %1131 = vmatprep.subr.mxu0 0.0
        %1132 = vmatpush1.msra.mxu0 0.0
        %1133 = vmatprep.subr.mxu0 0.0
        %1134 = vmatpush1.msra.mxu0 0.0
        %1135 = vmatprep.subr.mxu0 0.0
        %1136 = vmatpush1.msra.mxu0 0.0
        %1137 = vmatprep.subr.mxu0 0.0
        %1138 = vmatpush1.msra.mxu0 0.0
        %1139 = vmatprep.subr.mxu0 0.0
        %1140 = vmatpush1.msra.mxu0 0.0
        %1141 = vmatprep.subr.mxu0 0.0
        %1142 = vmatpush1.msra.mxu0 0.0
        %1143 = vmatprep.subr.mxu0 0.0
        %1144 = vmatpush1.msra.mxu0 0.0
        %1145 = vmatprep.subr.mxu0 0.0
        %1146 = vmatpush1.msra.mxu0 0.0
        %1147 = vmatprep.subr.mxu0 0.0
        %1148 = vmatpush1.msra.mxu0 0.0
        %1149 = vmatprep.subr.mxu0 0.0
        %1150 = vmatpush1.msra.mxu0 0.0
        %1151 = vmatprep.subr.mxu0 0.0
        %1152 = vmatpush1.msra.mxu0 0.0
        %1153 = vmatprep.subr.mxu0 0.0
        %1154 = vmatpush1.msra.mxu0 0.0
        %1155 = vmatprep.subr.mxu0 0.0
        %1156 = vmatpush1.msra.mxu0 0.0
        %1157 = vmatprep.subr.mxu0 0.0
        %1158 = vmatpush1.msra.mxu0 0.0
        %1159 = vmatprep.subr.mxu0 0.0
        %1160 = vmatpush1.msra.mxu0 0.0
        %1161 = vmatprep.subr.mxu0 0.0
        %1162 = vmatpush1.msra.mxu0 0.0
        %1163 = vmatprep.subr.mxu0 0.0
        %1164 = vmatpush1.msra.mxu0 0.0
        %1165 = vmatprep.mubr.f32.mxu0 0.0
        %v1166 = vand.u32 %v837, 4294901760
        %v1167 = vsub.f32 %v837, %v1166
        %v1168 = vand.u32 %v1167, 4294901760
        %1169 = vmatmul.mubr.f32.gmra.mrb[0].mxu0 %v1168
        %v1170 = vpop.f32.mrb[0].mxu0
        %v1171 = vadd.f32 %v1089, %v1170
        %v1172 = vpop.f32.mrb[0].mxu0
        %1173 = vmatprep.mubr.f32.mxu0 0.0
        %v1174 = vand.u32 %v840, 4294901760
        %v1175 = vsub.f32 %v840, %v1174
        %v1176 = vand.u32 %v1175, 4294901760
        %1177 = vmatmul.mubr.f32.gmra.mrb[0].mxu0 %v1176
        %v1178 = vpop.f32.mrb[0].mxu0
        %v1179 = vadd.f32 %v1096, %v1178
        %v1180 = vpop.f32.mrb[0].mxu0
        %1181 = vdwg.mxu0
        %1182 = vmatprep.subr.mxu0 0.0
        %v1183 = vand.u32 %v834, 4294901760
        %v1184 = vsub.f32 %v834, %v1183
        %v1185 = vand.u32 %v1184, 4294901760
        %1186 = vmatpush1.msra.mxu0 %v1185
        %1187 = vmatprep.subr.mxu0 0.0
        %v1188 = vand.u32 %v835, 4294901760
        %v1189 = vsub.f32 %v835, %v1188
        %v1190 = vand.u32 %v1189, 4294901760
        %1191 = vmatpush1.msra.mxu0 %v1190
        %1192 = vmatprep.subr.mxu0 0.0
        %1193 = vmatpush1.msra.mxu0 0.0
        %1194 = vmatprep.subr.mxu0 0.0
        %1195 = vmatpush1.msra.mxu0 0.0
        %1196 = vmatprep.subr.mxu0 0.0
        %1197 = vmatpush1.msra.mxu0 0.0
        %1198 = vmatprep.subr.mxu0 0.0
        %1199 = vmatpush1.msra.mxu0 0.0
        %1200 = vmatprep.subr.mxu0 0.0
        %1201 = vmatpush1.msra.mxu0 0.0
        %1202 = vmatprep.subr.mxu0 0.0
        %1203 = vmatpush1.msra.mxu0 0.0
        %1204 = vmatprep.subr.mxu0 0.0
        %1205 = vmatpush1.msra.mxu0 0.0
        %1206 = vmatprep.subr.mxu0 0.0
        %1207 = vmatpush1.msra.mxu0 0.0
        %1208 = vmatprep.subr.mxu0 0.0
        %1209 = vmatpush1.msra.mxu0 0.0
        %1210 = vmatprep.subr.mxu0 0.0
        %1211 = vmatpush1.msra.mxu0 0.0
        %1212 = vmatprep.subr.mxu0 0.0
        %1213 = vmatpush1.msra.mxu0 0.0
        %1214 = vmatprep.subr.mxu0 0.0
        %1215 = vmatpush1.msra.mxu0 0.0
        %1216 = vmatprep.subr.mxu0 0.0
        %1217 = vmatpush1.msra.mxu0 0.0
        %1218 = vmatprep.subr.mxu0 0.0
        %1219 = vmatpush1.msra.mxu0 0.0
        %1220 = vmatprep.subr.mxu0 0.0
        %1221 = vmatpush1.msra.mxu0 0.0
        %1222 = vmatprep.subr.mxu0 0.0
        %1223 = vmatpush1.msra.mxu0 0.0
        %1224 = vmatprep.subr.mxu0 0.0
        %1225 = vmatpush1.msra.mxu0 0.0
        %1226 = vmatprep.subr.mxu0 0.0
        %1227 = vmatpush1.msra.mxu0 0.0
        %1228 = vmatprep.subr.mxu0 0.0
        %1229 = vmatpush1.msra.mxu0 0.0
        %1230 = vmatprep.subr.mxu0 0.0
        %1231 = vmatpush1.msra.mxu0 0.0
        %1232 = vmatprep.subr.mxu0 0.0
        %1233 = vmatpush1.msra.mxu0 0.0
        %1234 = vmatprep.subr.mxu0 0.0
        %1235 = vmatpush1.msra.mxu0 0.0
        %1236 = vmatprep.subr.mxu0 0.0
        %1237 = vmatpush1.msra.mxu0 0.0
        %1238 = vmatprep.subr.mxu0 0.0
        %1239 = vmatpush1.msra.mxu0 0.0
        %1240 = vmatprep.subr.mxu0 0.0
        %1241 = vmatpush1.msra.mxu0 0.0
        %1242 = vmatprep.subr.mxu0 0.0
        %1243 = vmatpush1.msra.mxu0 0.0
        %1244 = vmatprep.subr.mxu0 0.0
        %1245 = vmatpush1.msra.mxu0 0.0
        %1246 = vmatprep.subr.mxu0 0.0
        %1247 = vmatpush1.msra.mxu0 0.0
        %1248 = vmatprep.subr.mxu0 0.0
        %1249 = vmatpush1.msra.mxu0 0.0
        %1250 = vmatprep.subr.mxu0 0.0
        %1251 = vmatpush1.msra.mxu0 0.0
        %1252 = vmatprep.mubr.f32.mxu0 0.0
        %v1253 = vand.u32 %v837, 4294901760
        %1254 = vmatmul.mubr.f32.gmra.mrb[0].mxu0 %v1253
        %v1255 = vpop.f32.mrb[0].mxu0
        %v1256 = vadd.f32 %v1171, %v1255
        %v1257 = vpop.f32.mrb[0].mxu0
        %1258 = vmatprep.mubr.f32.mxu0 0.0
        %v1259 = vand.u32 %v840, 4294901760
        %1260 = vmatmul.mubr.f32.gmra.mrb[0].mxu0 %v1259
        %v1261 = vpop.f32.mrb[0].mxu0
        %v1262 = vadd.f32 %v1179, %v1261
        %v1263 = vpop.f32.mrb[0].mxu0
        %1264 = vdwg.mxu0
        %1265 = vmatprep.subr.mxu0 0.0
        %v1266 = vand.u32 %v834, 4294901760
        %1267 = vmatpush1.msra.mxu0 %v1266
        %1268 = vmatprep.subr.mxu0 0.0
        %v1269 = vand.u32 %v835, 4294901760
        %1270 = vmatpush1.msra.mxu0 %v1269
        %1271 = vmatprep.subr.mxu0 0.0
        %1272 = vmatpush1.msra.mxu0 0.0
        %1273 = vmatprep.subr.mxu0 0.0
        %1274 = vmatpush1.msra.mxu0 0.0
        %1275 = vmatprep.subr.mxu0 0.0
        %1276 = vmatpush1.msra.mxu0 0.0
        %1277 = vmatprep.subr.mxu0 0.0
        %1278 = vmatpush1.msra.mxu0 0.0
        %1279 = vmatprep.subr.mxu0 0.0
        %1280 = vmatpush1.msra.mxu0 0.0
        %1281 = vmatprep.subr.mxu0 0.0
        %1282 = vmatpush1.msra.mxu0 0.0
        %1283 = vmatprep.subr.mxu0 0.0
        %1284 = vmatpush1.msra.mxu0 0.0
        %1285 = vmatprep.subr.mxu0 0.0
        %1286 = vmatpush1.msra.mxu0 0.0
        %1287 = vmatprep.subr.mxu0 0.0
        %1288 = vmatpush1.msra.mxu0 0.0
        %1289 = vmatprep.subr.mxu0 0.0
        %1290 = vmatpush1.msra.mxu0 0.0
        %1291 = vmatprep.subr.mxu0 0.0
        %1292 = vmatpush1.msra.mxu0 0.0
        %1293 = vmatprep.subr.mxu0 0.0
        %1294 = vmatpush1.msra.mxu0 0.0
        %1295 = vmatprep.subr.mxu0 0.0
        %1296 = vmatpush1.msra.mxu0 0.0
        %1297 = vmatprep.subr.mxu0 0.0
        %1298 = vmatpush1.msra.mxu0 0.0
        %1299 = vmatprep.subr.mxu0 0.0
        %1300 = vmatpush1.msra.mxu0 0.0
        %1301 = vmatprep.subr.mxu0 0.0
        %1302 = vmatpush1.msra.mxu0 0.0
        %1303 = vmatprep.subr.mxu0 0.0
        %1304 = vmatpush1.msra.mxu0 0.0
        %1305 = vmatprep.subr.mxu0 0.0
        %1306 = vmatpush1.msra.mxu0 0.0
        %1307 = vmatprep.subr.mxu0 0.0
        %1308 = vmatpush1.msra.mxu0 0.0
        %1309 = vmatprep.subr.mxu0 0.0
        %1310 = vmatpush1.msra.mxu0 0.0
        %1311 = vmatprep.subr.mxu0 0.0
        %1312 = vmatpush1.msra.mxu0 0.0
        %1313 = vmatprep.subr.mxu0 0.0
        %1314 = vmatpush1.msra.mxu0 0.0
        %1315 = vmatprep.subr.mxu0 0.0
        %1316 = vmatpush1.msra.mxu0 0.0
        %1317 = vmatprep.subr.mxu0 0.0
        %1318 = vmatpush1.msra.mxu0 0.0
        %1319 = vmatprep.subr.mxu0 0.0
        %1320 = vmatpush1.msra.mxu0 0.0
        %1321 = vmatprep.subr.mxu0 0.0
        %1322 = vmatpush1.msra.mxu0 0.0
        %1323 = vmatprep.subr.mxu0 0.0
        %1324 = vmatpush1.msra.mxu0 0.0
        %1325 = vmatprep.subr.mxu0 0.0
        %1326 = vmatpush1.msra.mxu0 0.0
        %1327 = vmatprep.subr.mxu0 0.0
        %1328 = vmatpush1.msra.mxu0 0.0
        %1329 = vmatprep.subr.mxu0 0.0
        %1330 = vmatpush1.msra.mxu0 0.0
        %1331 = vmatprep.mubr.f32.mxu0 0.0
        %v1332 = vand.u32 %v837, 4294901760
        %1333 = vmatmul.mubr.f32.gmra.mrb[0].mxu0 %v1332
        %v1334 = vpop.f32.mrb[0].mxu0
        %v1335 = vadd.f32 %v1256, %v1334
        %v1336 = vpop.f32.mrb[0].mxu0
        %1337 = vmatprep.mubr.f32.mxu0 0.0
        %v1338 = vand.u32 %v840, 4294901760
        %1339 = vmatmul.mubr.f32.gmra.mrb[0].mxu0 %v1338
        %v1340 = vpop.f32.mrb[0].mxu0
        %v1341 = vadd.f32 %v1262, %v1340
        %v1342 = vpop.f32.mrb[0].mxu0
        %1343 = vdwg.mxu0
        %1344 = vst.msk [vmem:[%s218] sm:$0xff] %vm227, %v1335
        %1345 = vst.msk [vmem:[%s218 + $0x8] sm:$0xff] %vm227, %v1341
        %s1346 = scalar_lea.vmem [#allocation2], 16
        %v1347 = vld [vmem:[%s1346] sm:$0xff]
        %v1348 = vld [vmem:[%s1346 + $0x8] sm:$0xff]
        %1349 = vmatprep.subr.mxu0 0.0
        %v1350 = vand.u32 %v1347, 4294901760
        %1351 = vmatpush1.msra.mxu0 %v1350
        %1352 = vmatprep.subr.mxu0 0.0
        %v1353 = vand.u32 %v1348, 4294901760
        %1354 = vmatpush1.msra.mxu0 %v1353
        %1355 = vmatprep.subr.mxu0 0.0
        %1356 = vmatpush1.msra.mxu0 0.0
        %1357 = vmatprep.subr.mxu0 0.0
        %1358 = vmatpush1.msra.mxu0 0.0
        %1359 = vmatprep.subr.mxu0 0.0
        %1360 = vmatpush1.msra.mxu0 0.0
        %1361 = vmatprep.subr.mxu0 0.0
        %1362 = vmatpush1.msra.mxu0 0.0
        %1363 = vmatprep.subr.mxu0 0.0
        %1364 = vmatpush1.msra.mxu0 0.0
        %1365 = vmatprep.subr.mxu0 0.0
        %1366 = vmatpush1.msra.mxu0 0.0
        %1367 = vmatprep.subr.mxu0 0.0
        %1368 = vmatpush1.msra.mxu0 0.0
        %1369 = vmatprep.subr.mxu0 0.0
        %1370 = vmatpush1.msra.mxu0 0.0
        %1371 = vmatprep.subr.mxu0 0.0
        %1372 = vmatpush1.msra.mxu0 0.0
        %1373 = vmatprep.subr.mxu0 0.0
        %1374 = vmatpush1.msra.mxu0 0.0
        %1375 = vmatprep.subr.mxu0 0.0
        %1376 = vmatpush1.msra.mxu0 0.0
        %1377 = vmatprep.subr.mxu0 0.0
        %1378 = vmatpush1.msra.mxu0 0.0
        %1379 = vmatprep.subr.mxu0 0.0
        %1380 = vmatpush1.msra.mxu0 0.0
        %1381 = vmatprep.subr.mxu0 0.0
        %1382 = vmatpush1.msra.mxu0 0.0
        %1383 = vmatprep.subr.mxu0 0.0
        %1384 = vmatpush1.msra.mxu0 0.0
        %1385 = vmatprep.subr.mxu0 0.0
        %1386 = vmatpush1.msra.mxu0 0.0
        %1387 = vmatprep.subr.mxu0 0.0
        %1388 = vmatpush1.msra.mxu0 0.0
        %1389 = vmatprep.subr.mxu0 0.0
        %1390 = vmatpush1.msra.mxu0 0.0
        %1391 = vmatprep.subr.mxu0 0.0
        %1392 = vmatpush1.msra.mxu0 0.0
        %1393 = vmatprep.subr.mxu0 0.0
        %1394 = vmatpush1.msra.mxu0 0.0
        %1395 = vmatprep.subr.mxu0 0.0
        %1396 = vmatpush1.msra.mxu0 0.0
        %1397 = vmatprep.subr.mxu0 0.0
        %1398 = vmatpush1.msra.mxu0 0.0
        %1399 = vmatprep.subr.mxu0 0.0
        %1400 = vmatpush1.msra.mxu0 0.0
        %1401 = vmatprep.subr.mxu0 0.0
        %1402 = vmatpush1.msra.mxu0 0.0
        %1403 = vmatprep.subr.mxu0 0.0
        %1404 = vmatpush1.msra.mxu0 0.0
        %1405 = vmatprep.subr.mxu0 0.0
        %1406 = vmatpush1.msra.mxu0 0.0
        %1407 = vmatprep.subr.mxu0 0.0
        %1408 = vmatpush1.msra.mxu0 0.0
        %1409 = vmatprep.subr.mxu0 0.0
        %1410 = vmatpush1.msra.mxu0 0.0
        %1411 = vmatprep.subr.mxu0 0.0
        %1412 = vmatpush1.msra.mxu0 0.0
        %1413 = vmatprep.subr.mxu0 0.0
        %1414 = vmatpush1.msra.mxu0 0.0
        %1415 = vmatprep.mubr.f32.mxu0 0.0
        %v1416 = vand.u32 %v837, 4294901760
        %v1417 = vsub.f32 %v837, %v1416
        %v1418 = vand.u32 %v1417, 4294901760
        %v1419 = vsub.f32 %v1417, %v1418
        %v1420 = vand.u32 %v1419, 4294901760
        %1421 = vmatmul.mubr.f32.gmra.mrb[0].mxu0 %v1420
        %v1422 = vpop.f32.mrb[0].mxu0
        %v1423 = vadd.f32 0.0, %v1422
        %v1424 = vpop.f32.mrb[0].mxu0
        %1425 = vmatprep.mubr.f32.mxu0 0.0
        %v1426 = vand.u32 %v840, 4294901760
        %v1427 = vsub.f32 %v840, %v1426
        %v1428 = vand.u32 %v1427, 4294901760
        %v1429 = vsub.f32 %v1427, %v1428
        %v1430 = vand.u32 %v1429, 4294901760
        %1431 = vmatmul.mubr.f32.gmra.mrb[0].mxu0 %v1430
        %v1432 = vpop.f32.mrb[0].mxu0
        %v1433 = vadd.f32 0.0, %v1432
        %v1434 = vpop.f32.mrb[0].mxu0
        %1435 = vdwg.mxu0
        %1436 = vmatprep.subr.mxu0 0.0
        %v1437 = vand.u32 %v1347, 4294901760
        %v1438 = vsub.f32 %v1347, %v1437
        %v1439 = vand.u32 %v1438, 4294901760
        %v1440 = vsub.f32 %v1438, %v1439
        %v1441 = vand.u32 %v1440, 4294901760
        %1442 = vmatpush1.msra.mxu0 %v1441
        %1443 = vmatprep.subr.mxu0 0.0
        %v1444 = vand.u32 %v1348, 4294901760
        %v1445 = vsub.f32 %v1348, %v1444
        %v1446 = vand.u32 %v1445, 4294901760
        %v1447 = vsub.f32 %v1445, %v1446
        %v1448 = vand.u32 %v1447, 4294901760
        %1449 = vmatpush1.msra.mxu0 %v1448
        %1450 = vmatprep.subr.mxu0 0.0
        %1451 = vmatpush1.msra.mxu0 0.0
        %1452 = vmatprep.subr.mxu0 0.0
        %1453 = vmatpush1.msra.mxu0 0.0
        %1454 = vmatprep.subr.mxu0 0.0
        %1455 = vmatpush1.msra.mxu0 0.0
        %1456 = vmatprep.subr.mxu0 0.0
        %1457 = vmatpush1.msra.mxu0 0.0
        %1458 = vmatprep.subr.mxu0 0.0
        %1459 = vmatpush1.msra.mxu0 0.0
        %1460 = vmatprep.subr.mxu0 0.0
        %1461 = vmatpush1.msra.mxu0 0.0
        %1462 = vmatprep.subr.mxu0 0.0
        %1463 = vmatpush1.msra.mxu0 0.0
        %1464 = vmatprep.subr.mxu0 0.0
        %1465 = vmatpush1.msra.mxu0 0.0
        %1466 = vmatprep.subr.mxu0 0.0
        %1467 = vmatpush1.msra.mxu0 0.0
        %1468 = vmatprep.subr.mxu0 0.0
        %1469 = vmatpush1.msra.mxu0 0.0
        %1470 = vmatprep.subr.mxu0 0.0
        %1471 = vmatpush1.msra.mxu0 0.0
        %1472 = vmatprep.subr.mxu0 0.0
        %1473 = vmatpush1.msra.mxu0 0.0
        %1474 = vmatprep.subr.mxu0 0.0
        %1475 = vmatpush1.msra.mxu0 0.0
        %1476 = vmatprep.subr.mxu0 0.0
        %1477 = vmatpush1.msra.mxu0 0.0
        %1478 = vmatprep.subr.mxu0 0.0
        %1479 = vmatpush1.msra.mxu0 0.0
        %1480 = vmatprep.subr.mxu0 0.0
        %1481 = vmatpush1.msra.mxu0 0.0
        %1482 = vmatprep.subr.mxu0 0.0
        %1483 = vmatpush1.msra.mxu0 0.0
        %1484 = vmatprep.subr.mxu0 0.0
        %1485 = vmatpush1.msra.mxu0 0.0
        %1486 = vmatprep.subr.mxu0 0.0
        %1487 = vmatpush1.msra.mxu0 0.0
        %1488 = vmatprep.subr.mxu0 0.0
        %1489 = vmatpush1.msra.mxu0 0.0
        %1490 = vmatprep.subr.mxu0 0.0
        %1491 = vmatpush1.msra.mxu0 0.0
        %1492 = vmatprep.subr.mxu0 0.0
        %1493 = vmatpush1.msra.mxu0 0.0
        %1494 = vmatprep.subr.mxu0 0.0
        %1495 = vmatpush1.msra.mxu0 0.0
        %1496 = vmatprep.subr.mxu0 0.0
        %1497 = vmatpush1.msra.mxu0 0.0
        %1498 = vmatprep.subr.mxu0 0.0
        %1499 = vmatpush1.msra.mxu0 0.0
        %1500 = vmatprep.subr.mxu0 0.0
        %1501 = vmatpush1.msra.mxu0 0.0
        %1502 = vmatprep.subr.mxu0 0.0
        %1503 = vmatpush1.msra.mxu0 0.0
        %1504 = vmatprep.subr.mxu0 0.0
        %1505 = vmatpush1.msra.mxu0 0.0
        %1506 = vmatprep.subr.mxu0 0.0
        %1507 = vmatpush1.msra.mxu0 0.0
        %1508 = vmatprep.subr.mxu0 0.0
        %1509 = vmatpush1.msra.mxu0 0.0
        %1510 = vmatprep.mubr.f32.mxu0 0.0
        %v1511 = vand.u32 %v837, 4294901760
        %1512 = vmatmul.mubr.f32.gmra.mrb[0].mxu0 %v1511
        %v1513 = vpop.f32.mrb[0].mxu0
        %v1514 = vadd.f32 %v1423, %v1513
        %v1515 = vpop.f32.mrb[0].mxu0
        %1516 = vmatprep.mubr.f32.mxu0 0.0
        %v1517 = vand.u32 %v840, 4294901760
        %1518 = vmatmul.mubr.f32.gmra.mrb[0].mxu0 %v1517
        %v1519 = vpop.f32.mrb[0].mxu0
        %v1520 = vadd.f32 %v1433, %v1519
        %v1521 = vpop.f32.mrb[0].mxu0
        %1522 = vdwg.mxu0
        %1523 = vmatprep.subr.mxu0 0.0
        %v1524 = vand.u32 %v1347, 4294901760
        %v1525 = vsub.f32 %v1347, %v1524
        %1526 = vmatpush1.msra.mxu0 %v1525
        %1527 = vmatprep.subr.mxu0 0.0
        %v1528 = vand.u32 %v1348, 4294901760
        %v1529 = vsub.f32 %v1348, %v1528
        %1530 = vmatpush1.msra.mxu0 %v1529
        %1531 = vmatprep.subr.mxu0 0.0
        %1532 = vmatpush1.msra.mxu0 0.0
        %1533 = vmatprep.subr.mxu0 0.0
        %1534 = vmatpush1.msra.mxu0 0.0
        %1535 = vmatprep.subr.mxu0 0.0
        %1536 = vmatpush1.msra.mxu0 0.0
        %1537 = vmatprep.subr.mxu0 0.0
        %1538 = vmatpush1.msra.mxu0 0.0
        %1539 = vmatprep.subr.mxu0 0.0
        %1540 = vmatpush1.msra.mxu0 0.0
        %1541 = vmatprep.subr.mxu0 0.0
        %1542 = vmatpush1.msra.mxu0 0.0
        %1543 = vmatprep.subr.mxu0 0.0
        %1544 = vmatpush1.msra.mxu0 0.0
        %1545 = vmatprep.subr.mxu0 0.0
        %1546 = vmatpush1.msra.mxu0 0.0
        %1547 = vmatprep.subr.mxu0 0.0
        %1548 = vmatpush1.msra.mxu0 0.0
        %1549 = vmatprep.subr.mxu0 0.0
        %1550 = vmatpush1.msra.mxu0 0.0
        %1551 = vmatprep.subr.mxu0 0.0
        %1552 = vmatpush1.msra.mxu0 0.0
        %1553 = vmatprep.subr.mxu0 0.0
        %1554 = vmatpush1.msra.mxu0 0.0
        %1555 = vmatprep.subr.mxu0 0.0
        %1556 = vmatpush1.msra.mxu0 0.0
        %1557 = vmatprep.subr.mxu0 0.0
        %1558 = vmatpush1.msra.mxu0 0.0
        %1559 = vmatprep.subr.mxu0 0.0
        %1560 = vmatpush1.msra.mxu0 0.0
        %1561 = vmatprep.subr.mxu0 0.0
        %1562 = vmatpush1.msra.mxu0 0.0
        %1563 = vmatprep.subr.mxu0 0.0
        %1564 = vmatpush1.msra.mxu0 0.0
        %1565 = vmatprep.subr.mxu0 0.0
        %1566 = vmatpush1.msra.mxu0 0.0
        %1567 = vmatprep.subr.mxu0 0.0
        %1568 = vmatpush1.msra.mxu0 0.0
        %1569 = vmatprep.subr.mxu0 0.0
        %1570 = vmatpush1.msra.mxu0 0.0
        %1571 = vmatprep.subr.mxu0 0.0
        %1572 = vmatpush1.msra.mxu0 0.0
        %1573 = vmatprep.subr.mxu0 0.0
        %1574 = vmatpush1.msra.mxu0 0.0
        %1575 = vmatprep.subr.mxu0 0.0
        %1576 = vmatpush1.msra.mxu0 0.0
        %1577 = vmatprep.subr.mxu0 0.0
        %1578 = vmatpush1.msra.mxu0 0.0
        %1579 = vmatprep.subr.mxu0 0.0
        %1580 = vmatpush1.msra.mxu0 0.0
        %1581 = vmatprep.subr.mxu0 0.0
        %1582 = vmatpush1.msra.mxu0 0.0
        %1583 = vmatprep.subr.mxu0 0.0
        %1584 = vmatpush1.msra.mxu0 0.0
        %1585 = vmatprep.subr.mxu0 0.0
        %1586 = vmatpush1.msra.mxu0 0.0
        %1587 = vmatprep.subr.mxu0 0.0
        %1588 = vmatpush1.msra.mxu0 0.0
        %1589 = vmatprep.subr.mxu0 0.0
        %1590 = vmatpush1.msra.mxu0 0.0
        %1591 = vmatprep.mubr.f32.mxu0 0.0
        %v1592 = vand.u32 %v837, 4294901760
        %v1593 = vsub.f32 %v837, %v1592
        %1594 = vmatmul.mubr.f32.gmra.mrb[0].mxu0 %v1593
        %v1595 = vpop.f32.mrb[0].mxu0
        %v1596 = vadd.f32 %v1514, %v1595
        %v1597 = vpop.f32.mrb[0].mxu0
        %1598 = vmatprep.mubr.f32.mxu0 0.0
        %v1599 = vand.u32 %v840, 4294901760
        %v1600 = vsub.f32 %v840, %v1599
        %1601 = vmatmul.mubr.f32.gmra.mrb[0].mxu0 %v1600
        %v1602 = vpop.f32.mrb[0].mxu0
        %v1603 = vadd.f32 %v1520, %v1602
        %v1604 = vpop.f32.mrb[0].mxu0
        %1605 = vdwg.mxu0
        %1606 = vmatprep.subr.mxu0 0.0
        %v1607 = vand.u32 %v1347, 4294901760
        %1608 = vmatpush1.msra.mxu0 %v1607
        %1609 = vmatprep.subr.mxu0 0.0
        %v1610 = vand.u32 %v1348, 4294901760
        %1611 = vmatpush1.msra.mxu0 %v1610
        %1612 = vmatprep.subr.mxu0 0.0
        %1613 = vmatpush1.msra.mxu0 0.0
        %1614 = vmatprep.subr.mxu0 0.0
        %1615 = vmatpush1.msra.mxu0 0.0
        %1616 = vmatprep.subr.mxu0 0.0
        %1617 = vmatpush1.msra.mxu0 0.0
        %1618 = vmatprep.subr.mxu0 0.0
        %1619 = vmatpush1.msra.mxu0 0.0
        %1620 = vmatprep.subr.mxu0 0.0
        %1621 = vmatpush1.msra.mxu0 0.0
        %1622 = vmatprep.subr.mxu0 0.0
        %1623 = vmatpush1.msra.mxu0 0.0
        %1624 = vmatprep.subr.mxu0 0.0
        %1625 = vmatpush1.msra.mxu0 0.0
        %1626 = vmatprep.subr.mxu0 0.0
        %1627 = vmatpush1.msra.mxu0 0.0
        %1628 = vmatprep.subr.mxu0 0.0
        %1629 = vmatpush1.msra.mxu0 0.0
        %1630 = vmatprep.subr.mxu0 0.0
        %1631 = vmatpush1.msra.mxu0 0.0
        %1632 = vmatprep.subr.mxu0 0.0
        %1633 = vmatpush1.msra.mxu0 0.0
        %1634 = vmatprep.subr.mxu0 0.0
        %1635 = vmatpush1.msra.mxu0 0.0
        %1636 = vmatprep.subr.mxu0 0.0
        %1637 = vmatpush1.msra.mxu0 0.0
        %1638 = vmatprep.subr.mxu0 0.0
        %1639 = vmatpush1.msra.mxu0 0.0
        %1640 = vmatprep.subr.mxu0 0.0
        %1641 = vmatpush1.msra.mxu0 0.0
        %1642 = vmatprep.subr.mxu0 0.0
        %1643 = vmatpush1.msra.mxu0 0.0
        %1644 = vmatprep.subr.mxu0 0.0
        %1645 = vmatpush1.msra.mxu0 0.0
        %1646 = vmatprep.subr.mxu0 0.0
        %1647 = vmatpush1.msra.mxu0 0.0
        %1648 = vmatprep.subr.mxu0 0.0
        %1649 = vmatpush1.msra.mxu0 0.0
        %1650 = vmatprep.subr.mxu0 0.0
        %1651 = vmatpush1.msra.mxu0 0.0
        %1652 = vmatprep.subr.mxu0 0.0
        %1653 = vmatpush1.msra.mxu0 0.0
        %1654 = vmatprep.subr.mxu0 0.0
        %1655 = vmatpush1.msra.mxu0 0.0
        %1656 = vmatprep.subr.mxu0 0.0
        %1657 = vmatpush1.msra.mxu0 0.0
        %1658 = vmatprep.subr.mxu0 0.0
        %1659 = vmatpush1.msra.mxu0 0.0
        %1660 = vmatprep.subr.mxu0 0.0
        %1661 = vmatpush1.msra.mxu0 0.0
        %1662 = vmatprep.subr.mxu0 0.0
        %1663 = vmatpush1.msra.mxu0 0.0
        %1664 = vmatprep.subr.mxu0 0.0
        %1665 = vmatpush1.msra.mxu0 0.0
        %1666 = vmatprep.subr.mxu0 0.0
        %1667 = vmatpush1.msra.mxu0 0.0
        %1668 = vmatprep.subr.mxu0 0.0
        %1669 = vmatpush1.msra.mxu0 0.0
        %1670 = vmatprep.subr.mxu0 0.0
        %1671 = vmatpush1.msra.mxu0 0.0
        %1672 = vmatprep.mubr.f32.mxu0 0.0
        %v1673 = vand.u32 %v837, 4294901760
        %v1674 = vsub.f32 %v837, %v1673
        %v1675 = vand.u32 %v1674, 4294901760
        %1676 = vmatmul.mubr.f32.gmra.mrb[0].mxu0 %v1675
        %v1677 = vpop.f32.mrb[0].mxu0
        %v1678 = vadd.f32 %v1596, %v1677
        %v1679 = vpop.f32.mrb[0].mxu0
        %1680 = vmatprep.mubr.f32.mxu0 0.0
        %v1681 = vand.u32 %v840, 4294901760
        %v1682 = vsub.f32 %v840, %v1681
        %v1683 = vand.u32 %v1682, 4294901760
        %1684 = vmatmul.mubr.f32.gmra.mrb[0].mxu0 %v1683
        %v1685 = vpop.f32.mrb[0].mxu0
        %v1686 = vadd.f32 %v1603, %v1685
        %v1687 = vpop.f32.mrb[0].mxu0
        %1688 = vdwg.mxu0
        %1689 = vmatprep.subr.mxu0 0.0
        %v1690 = vand.u32 %v1347, 4294901760
        %v1691 = vsub.f32 %v1347, %v1690
        %v1692 = vand.u32 %v1691, 4294901760
        %1693 = vmatpush1.msra.mxu0 %v1692
        %1694 = vmatprep.subr.mxu0 0.0
        %v1695 = vand.u32 %v1348, 4294901760
        %v1696 = vsub.f32 %v1348, %v1695
        %v1697 = vand.u32 %v1696, 4294901760
        %1698 = vmatpush1.msra.mxu0 %v1697
        %1699 = vmatprep.subr.mxu0 0.0
        %1700 = vmatpush1.msra.mxu0 0.0
        %1701 = vmatprep.subr.mxu0 0.0
        %1702 = vmatpush1.msra.mxu0 0.0
        %1703 = vmatprep.subr.mxu0 0.0
        %1704 = vmatpush1.msra.mxu0 0.0
        %1705 = vmatprep.subr.mxu0 0.0
        %1706 = vmatpush1.msra.mxu0 0.0
        %1707 = vmatprep.subr.mxu0 0.0
        %1708 = vmatpush1.msra.mxu0 0.0
        %1709 = vmatprep.subr.mxu0 0.0
        %1710 = vmatpush1.msra.mxu0 0.0
        %1711 = vmatprep.subr.mxu0 0.0
        %1712 = vmatpush1.msra.mxu0 0.0
        %1713 = vmatprep.subr.mxu0 0.0
        %1714 = vmatpush1.msra.mxu0 0.0
        %1715 = vmatprep.subr.mxu0 0.0
        %1716 = vmatpush1.msra.mxu0 0.0
        %1717 = vmatprep.subr.mxu0 0.0
        %1718 = vmatpush1.msra.mxu0 0.0
        %1719 = vmatprep.subr.mxu0 0.0
        %1720 = vmatpush1.msra.mxu0 0.0
        %1721 = vmatprep.subr.mxu0 0.0
        %1722 = vmatpush1.msra.mxu0 0.0
        %1723 = vmatprep.subr.mxu0 0.0
        %1724 = vmatpush1.msra.mxu0 0.0
        %1725 = vmatprep.subr.mxu0 0.0
        %1726 = vmatpush1.msra.mxu0 0.0
        %1727 = vmatprep.subr.mxu0 0.0
        %1728 = vmatpush1.msra.mxu0 0.0
        %1729 = vmatprep.subr.mxu0 0.0
        %1730 = vmatpush1.msra.mxu0 0.0
        %1731 = vmatprep.subr.mxu0 0.0
        %1732 = vmatpush1.msra.mxu0 0.0
        %1733 = vmatprep.subr.mxu0 0.0
        %1734 = vmatpush1.msra.mxu0 0.0
        %1735 = vmatprep.subr.mxu0 0.0
        %1736 = vmatpush1.msra.mxu0 0.0
        %1737 = vmatprep.subr.mxu0 0.0
        %1738 = vmatpush1.msra.mxu0 0.0
        %1739 = vmatprep.subr.mxu0 0.0
        %1740 = vmatpush1.msra.mxu0 0.0
        %1741 = vmatprep.subr.mxu0 0.0
        %1742 = vmatpush1.msra.mxu0 0.0
        %1743 = vmatprep.subr.mxu0 0.0
        %1744 = vmatpush1.msra.mxu0 0.0
        %1745 = vmatprep.subr.mxu0 0.0
        %1746 = vmatpush1.msra.mxu0 0.0
        %1747 = vmatprep.subr.mxu0 0.0
        %1748 = vmatpush1.msra.mxu0 0.0
        %1749 = vmatprep.subr.mxu0 0.0
        %1750 = vmatpush1.msra.mxu0 0.0
        %1751 = vmatprep.subr.mxu0 0.0
        %1752 = vmatpush1.msra.mxu0 0.0
        %1753 = vmatprep.subr.mxu0 0.0
        %1754 = vmatpush1.msra.mxu0 0.0
        %1755 = vmatprep.subr.mxu0 0.0
        %1756 = vmatpush1.msra.mxu0 0.0
        %1757 = vmatprep.subr.mxu0 0.0
        %1758 = vmatpush1.msra.mxu0 0.0
        %1759 = vmatprep.mubr.f32.mxu0 0.0
        %v1760 = vand.u32 %v837, 4294901760
        %1761 = vmatmul.mubr.f32.gmra.mrb[0].mxu0 %v1760
        %v1762 = vpop.f32.mrb[0].mxu0
        %v1763 = vadd.f32 %v1678, %v1762
        %v1764 = vpop.f32.mrb[0].mxu0
        %1765 = vmatprep.mubr.f32.mxu0 0.0
        %v1766 = vand.u32 %v840, 4294901760
        %1767 = vmatmul.mubr.f32.gmra.mrb[0].mxu0 %v1766
        %v1768 = vpop.f32.mrb[0].mxu0
        %v1769 = vadd.f32 %v1686, %v1768
        %v1770 = vpop.f32.mrb[0].mxu0
        %1771 = vdwg.mxu0
        %1772 = vmatprep.subr.mxu0 0.0
        %v1773 = vand.u32 %v1347, 4294901760
        %1774 = vmatpush1.msra.mxu0 %v1773
        %1775 = vmatprep.subr.mxu0 0.0
        %v1776 = vand.u32 %v1348, 4294901760
        %1777 = vmatpush1.msra.mxu0 %v1776
        %1778 = vmatprep.subr.mxu0 0.0
        %1779 = vmatpush1.msra.mxu0 0.0
        %1780 = vmatprep.subr.mxu0 0.0
        %1781 = vmatpush1.msra.mxu0 0.0
        %1782 = vmatprep.subr.mxu0 0.0
        %1783 = vmatpush1.msra.mxu0 0.0
        %1784 = vmatprep.subr.mxu0 0.0
        %1785 = vmatpush1.msra.mxu0 0.0
        %1786 = vmatprep.subr.mxu0 0.0
        %1787 = vmatpush1.msra.mxu0 0.0
        %1788 = vmatprep.subr.mxu0 0.0
        %1789 = vmatpush1.msra.mxu0 0.0
        %1790 = vmatprep.subr.mxu0 0.0
        %1791 = vmatpush1.msra.mxu0 0.0
        %1792 = vmatprep.subr.mxu0 0.0
        %1793 = vmatpush1.msra.mxu0 0.0
        %1794 = vmatprep.subr.mxu0 0.0
        %1795 = vmatpush1.msra.mxu0 0.0
        %1796 = vmatprep.subr.mxu0 0.0
        %1797 = vmatpush1.msra.mxu0 0.0
        %1798 = vmatprep.subr.mxu0 0.0
        %1799 = vmatpush1.msra.mxu0 0.0
        %1800 = vmatprep.subr.mxu0 0.0
        %1801 = vmatpush1.msra.mxu0 0.0
        %1802 = vmatprep.subr.mxu0 0.0
        %1803 = vmatpush1.msra.mxu0 0.0
        %1804 = vmatprep.subr.mxu0 0.0
        %1805 = vmatpush1.msra.mxu0 0.0
        %1806 = vmatprep.subr.mxu0 0.0
        %1807 = vmatpush1.msra.mxu0 0.0
        %1808 = vmatprep.subr.mxu0 0.0
        %1809 = vmatpush1.msra.mxu0 0.0
        %1810 = vmatprep.subr.mxu0 0.0
        %1811 = vmatpush1.msra.mxu0 0.0
        %1812 = vmatprep.subr.mxu0 0.0
        %1813 = vmatpush1.msra.mxu0 0.0
        %1814 = vmatprep.subr.mxu0 0.0
        %1815 = vmatpush1.msra.mxu0 0.0
        %1816 = vmatprep.subr.mxu0 0.0
        %1817 = vmatpush1.msra.mxu0 0.0
        %1818 = vmatprep.subr.mxu0 0.0
        %1819 = vmatpush1.msra.mxu0 0.0
        %1820 = vmatprep.subr.mxu0 0.0
        %1821 = vmatpush1.msra.mxu0 0.0
        %1822 = vmatprep.subr.mxu0 0.0
        %1823 = vmatpush1.msra.mxu0 0.0
        %1824 = vmatprep.subr.mxu0 0.0
        %1825 = vmatpush1.msra.mxu0 0.0
        %1826 = vmatprep.subr.mxu0 0.0
        %1827 = vmatpush1.msra.mxu0 0.0
        %1828 = vmatprep.subr.mxu0 0.0
        %1829 = vmatpush1.msra.mxu0 0.0
        %1830 = vmatprep.subr.mxu0 0.0
        %1831 = vmatpush1.msra.mxu0 0.0
        %1832 = vmatprep.subr.mxu0 0.0
        %1833 = vmatpush1.msra.mxu0 0.0
        %1834 = vmatprep.subr.mxu0 0.0
        %1835 = vmatpush1.msra.mxu0 0.0
        %1836 = vmatprep.subr.mxu0 0.0
        %1837 = vmatpush1.msra.mxu0 0.0
        %1838 = vmatprep.mubr.f32.mxu0 0.0
        %v1839 = vand.u32 %v837, 4294901760
        %1840 = vmatmul.mubr.f32.gmra.mrb[0].mxu0 %v1839
        %v1841 = vpop.f32.mrb[0].mxu0
        %v1842 = vadd.f32 %v1763, %v1841
        %v1843 = vpop.f32.mrb[0].mxu0
        %1844 = vmatprep.mubr.f32.mxu0 0.0
        %v1845 = vand.u32 %v840, 4294901760
        %1846 = vmatmul.mubr.f32.gmra.mrb[0].mxu0 %v1845
        %v1847 = vpop.f32.mrb[0].mxu0
        %v1848 = vadd.f32 %v1769, %v1847
        %v1849 = vpop.f32.mrb[0].mxu0
        %1850 = vdwg.mxu0
        %s1851 = scalar_lea.vmem %s218, 16 [#allocation9]
        %1852 = vst.msk [vmem:[%s1851] sm:$0xff] %vm227, %v1842
        %1853 = vst.msk [vmem:[%s1851 + $0x8] sm:$0xff] %vm227, %v1848
        %s1854 = sand.u32 %s97, 1
        %s1855 = scalar_lea.sflag [#allocation5], %s1854
        %s1856 = sand.u32 %s97, 1
        %s1857 = smul.addr %s1856, 32
        %s1858 = scalar_lea.vmem [#allocation9], %s1857
        // Predicated region
        $region45: #{tpu_custom_call.1} parent=31 // pred_check
          %p1859 = pneg %p107
        $region46: #{tpu_custom_call.1} parent=31 // pred_check_branch
          %1861 = sbr.rel (%p1859) target = $region48
        $region47: #{tpu_custom_call.1} parent=31 // pred_region
          %s1862 = smul.u32 2, %s21
          %s1864 = ssub.s32 512, 512
          %1865 = vsyncadd %s1855, %s1864
          %s1866 = smul.addr %s1862, 2
          %s1867 = smul.addr %s1866, 128
          %s1868 = scalar_lea.hbm %s3, %s1867
          %s1869 = sshll.u32 %s1858, 4
          %s1870 = int_to_ptr.vmem [resolvable:$true] %s1869
          %1875 = dma.vmem_to_hbm [thread:$0]  %s1870, 512, %s1868, %s1855, 128, 128, 8
        $region48: #{tpu_custom_call.1} parent=31 // pred_fallthru
          _
      $region32: #{tpu_custom_call.1} parent=5 // pred_fallthru
        _
      %p1876 = scmp.le.s32.totalorder 2, %s16
      // Predicated region
      $region49: #{tpu_custom_call.1} parent=5 // pred_check
        %p1877 = pneg %p1876
      $region50: #{tpu_custom_call.1} parent=5 // pred_check_branch
        %1879 = sbr.rel (%p1877) target = $region52
      $region51: #{tpu_custom_call.1} parent=5 // pred_region
        %s1880 = ssub.s32 %s16, 2
        // Predicated region
        $region53: #{tpu_custom_call.1} parent=51 // pred_check
          %p1881 = pneg %p113
        $region54: #{tpu_custom_call.1} parent=51 // pred_check_branch
          %1883 = sbr.rel (%p1881) target = $region56
        $region55: #{tpu_custom_call.1} parent=51 // pred_region
          %s1884 = sand.u32 %s98, 1
          %s1885 = scalar_lea.sflag [#allocation5], %s1884
          %s1886 = sand.u32 %s98, 1
          %s1887 = smul.addr %s1886, 32
          %s1888 = scalar_lea.vmem [#allocation9], %s1887
          %1889 = dma.done %s1885, 512
        $region56: #{tpu_custom_call.1} parent=51 // pred_fallthru
          _
      $region52: #{tpu_custom_call.1} parent=5 // pred_fallthru
        _
    $region6: #{tpu_custom_call.1} parent=1 // loop_footer
      %s20 = sadd.s32 1, %s16
    $region7: #{tpu_custom_call.1} parent=1 // loop_footer_branch
      %15 = sbr.rel target = $region3
    $region8: #{tpu_custom_call.1} parent=1 // loop_exit
      _
    %1890 = vsyncpa [#allocation4], 1
    %s1891 = scalar_lea.sflag [#allocation4], 1
    %1892 = vsyncpa %s1891, 1
    %1893 = vsyncpa [#allocation7], 1
    %1894 = vsyncpa [#allocation5], 1
    %s1895 = scalar_lea.sflag [#allocation5], 1
    %1896 = vsyncpa %s1895, 1

</llo_original>
